<compile_context>
chip_gen: v7x
topology: tpu7x:2x2x1
jax: 0.10.0
libtpu: 0.0.40
codegen_flags: <defaults>
</compile_context>

<pallas_src>
import functools

import jax
import jax.numpy as jnp
from jax.experimental import pallas as pl
from jax.experimental.pallas import tpu as pltpu

# ---- module configuration (mirrors SpectralInterpolationND.__init__) --------
NS = [16, 16]
BASES = ["chebyshev", "fourier"]
DOMAINS = [(0.0, 2.0), (0.0, 1.0)]
M_EVAL = [8, 8]
EPS = 1e-14  # NOTE: effectively unreachable in f32; mirrors the torch default.


def _setup_constants():
    """Per-dimension nodes / weights / frequencies (pure parameter setup)."""
    consts = {}
    N0, N1 = NS

    # dim 0: chebyshev
    i = jnp.linspace(0.0, 1.0, N0, dtype=jnp.float32)
    consts["nodes0_std"] = jnp.cos(jnp.pi * i)
    # Barycentric weights, mirroring the torch init ORDER: weights[1::2] = -1
    # intentionally overwrites the 0.5 endpoint factor at the last (odd) index.
    w0 = jnp.ones((N0,), jnp.float32)
    w0 = w0.at[0].multiply(0.5)
    w0 = w0.at[-1].multiply(0.5)
    w0 = w0.at[1::2].set(-1.0)
    consts["w0"] = w0

    # dim 1: fourier
    k1 = (jnp.fft.fftfreq(N1) * N1).astype(jnp.float32)
    consts["k1"] = k1
    # Doubled frequency column + phase column: cos(k*x - 0) on the first half,
    # cos(k*x - pi/2) = sin(k*x) on the second half -> one EUP cos, no concat.
    consts["k1_ext"] = jnp.concatenate([k1, k1])
    consts["phase_ext"] = jnp.concatenate(
        [jnp.zeros((N1,), jnp.float32),
         jnp.full((N1,), jnp.pi / 2.0, jnp.float32)])
    # Fused DFT table [DFT_cos | DFT_sin] with the 1/N1 normalization folded in.
    n = jnp.arange(N1, dtype=jnp.float32)
    ang = 2.0 * jnp.pi * n[:, None] * n[None, :] / N1          # (N1, N1)
    consts["dft_cs"] = jnp.concatenate(
        [jnp.cos(ang), jnp.sin(ang)], axis=1) / N1             # (N1, 2*N1)
    return consts


# ----------------------------- Pallas kernel ---------------------------------
def _spectral_kernel(values_ref, slab_ref, dftcs_ref, out_ref,
                     *, dom0_lo, len0, dom1_lo, len1):
    f32 = jnp.float32
    # fp32 contraction kept: DEFAULT (bf16, 1 pass) fails the 2e-3 re-validation
    # budget; HIGH (3-pass) is not reliably supported by the Mosaic dot lowering.
    prec = jax.lax.Precision.HIGHEST

    m0, m1 = out_ref.shape
    n0, n1 = values_ref.shape

    # ---- unpack the single input slab (static ref slices, no DMA) -----------
    nodes0 = slab_ref[0:1, 0:n0]                  # (1, N0)  Chebyshev nodes
    w0     = slab_ref[1:2, 0:n0]                  # (1, N0)  barycentric weights
    x1_row = slab_ref[2:3, 0:m1]                  # (1, m1)  Fourier eval points
    k1_ext = slab_ref[:, n0:n0 + 1]               # (2*N1,1) [k1 ; k1]
    phase  = slab_ref[:, n0 + 1:n0 + 2]           # (2*N1,1) [0 ; pi/2]
    x0_col = slab_ref[0:m0, n0 + 2:n0 + 3]        # (m0, 1)  Chebyshev eval pts

    # ---- dim 0 (Chebyshev): barycentric weights (VPU, (m0,N0)) --------------
    x0_std = 2.0 * (x0_col - dom0_lo) / len0 - 1.0             # (m0, 1)
    d_x = x0_std - nodes0                                      # (m0, N0)
    small = jnp.abs(d_x) < EPS                                 # exact-node hit
    small_row = jnp.max(small.astype(f32), axis=-1, keepdims=True) > 0.5
    inv = 1.0 / d_x
    d_x = jnp.where(small_row, jnp.zeros_like(inv), inv)
    d_x = jnp.where(small, jnp.ones_like(d_x), d_x)
    dw = d_x * w0                                              # un-normalized

    # MXU starts immediately on the un-normalized contraction; the denominator
    # reduce (XLU) and exact reciprocal (EUP) overlap with it.
    v1_raw = jnp.dot(dw, values_ref[...],
                     preferred_element_type=f32, precision=prec)   # (m0, N1)
    den = jnp.sum(dw, axis=-1, keepdims=True)                  # (m0, 1)
    inv_den = 1.0 / den                                        # exact divide

    # ---- dim 1 (Fourier): FFT folded into ONE fused DFT-eval matmul ---------
    # cs rows [0,N1) = cos(k*x1_std), rows [N1,2N1) = sin(k*x1_std); a single
    # K=2*N1 matmul against [DFT_cos | DFT_sin]/N1 yields the eval matrix ct.
    x1_std = 2.0 * jnp.pi * (x1_row - dom1_lo) / len1          # (1, m1)
    theta = k1_ext * x1_std - phase                            # (2*N1, m1)
    cs = jnp.cos(theta)                                        # (2*N1, m1)
    ct = jnp.dot(dftcs_ref[...], cs,
                 preferred_element_type=f32, precision=prec)   # (N1, m1)

    # Deferred barycentric normalization + final combine (1/N1 pre-folded).
    v1 = v1_raw * inv_den                                      # (m0, N1)
    out_ref[...] = jnp.dot(v1, ct, preferred_element_type=f32,
                           precision=prec).astype(out_ref.dtype)


def spectral_interpolation_forward(values, x_eval, consts):
    """forward(x_eval) of SpectralInterpolationND; `values` is the nn.Parameter."""
    x0, x1 = x_eval
    N0, N1 = values.shape
    m0, m1 = x0.shape[0], x1.shape[0]
    dom0, dom1 = DOMAINS

    # ---- pack the five tiny vectors into ONE slab (single input DMA) --------
    # Layout, shape (2*N1, N0+3):
    #   row 0, lanes [0:N0)      : Chebyshev standard nodes
    #   row 1, lanes [0:N0)      : barycentric weights
    #   row 2, lanes [0:m1)      : Fourier eval points x1
    #   lane N0,   rows [0:2*N1) : [k1 ; k1]
    #   lane N0+1, rows [0:2*N1) : [0 ; pi/2]   (phase turning cos into sin)
    #   lane N0+2, rows [0:m0)   : Chebyshev eval points x0
    slab = jnp.zeros((2 * N1, N0 + 3), jnp.float32)
    slab = slab.at[0, 0:N0].set(consts["nodes0_std"])
    slab = slab.at[1, 0:N0].set(consts["w0"])
    slab = slab.at[2, 0:m1].set(x1.astype(jnp.float32))
    slab = slab.at[:, N0].set(consts["k1_ext"])
    slab = slab.at[:, N0 + 1].set(consts["phase_ext"])
    slab = slab.at[0:m0, N0 + 2].set(x0.astype(jnp.float32))

    kern = functools.partial(
        _spectral_kernel,
        dom0_lo=float(dom0[0]), len0=float(dom0[1] - dom0[0]),
        dom1_lo=float(dom1[0]), len1=float(dom1[1] - dom1[0]),
    )

    vmem = pltpu.MemorySpace.VMEM
    return pl.pallas_call(
        kern,
        out_shape=jax.ShapeDtypeStruct((m0, m1), jnp.float32),
        in_specs=[pl.BlockSpec(memory_space=vmem)] * 3,
        out_specs=pl.BlockSpec(memory_space=vmem),
    )(values.astype(jnp.float32), slab, consts["dft_cs"])


# -------------------- pure-JAX reference (mirrors the torch code) ------------
def reference_forward(values, x_eval, consts):
    x0, x1 = x_eval
    N0, N1 = values.shape
    dom0, dom1 = DOMAINS
    len0 = dom0[1] - dom0[0]
    len1 = dom1[1] - dom1[0]

    # _cheb_interpolate_1ofnd, dim=0
    vm = jnp.moveaxis(values, 0, -1)                 # (N1, N0)
    batch_shape = vm.shape[:-1]
    vr = vm.reshape(-1, 1, N0)
    xe = x0[:, None]
    xs = 2.0 * (xe - dom0[0]) / len0 - 1.0
    d_x = xs[:, None, :, None] - consts["nodes0_std"][None, None, None, :]
    small = jnp.abs(d_x) < EPS
    small_max = jnp.any(small, axis=-1, keepdims=True)
    d_x = jnp.where(small_max, 0.0, 1.0 / d_x)
    d_x = jnp.where(small, 1.0, d_x)
    w = consts["w0"][None, None, None, :]
    num = jnp.sum(vr[None] * d_x * w, axis=-1)
    den = jnp.sum(d_x * w, axis=-1)
    interp = (num / den).reshape(x0.shape[0], *batch_shape)   # (m0, N1)

    # _fourier_interpolate_1ofnd, dim=1
    vm = jnp.moveaxis(interp, 1, -1)                 # (m0, N1)
    batch_shape = vm.shape[:-1]
    vr = vm.reshape(-1, 1, N1)
    xe = x1[:, None]
    xs = 2.0 * jnp.pi * (xe - dom1[0]) / len1
    coeffs = jnp.fft.fft(vr, axis=-1)
    xm = xs[:, None, :, None] * consts["k1"][None, None, None, :]
    fm = jnp.exp(1j * xm)
    res = jnp.real(jnp.sum(fm * coeffs[None], axis=-1)) / N1  # (m1, m0, 1)
    res = res.reshape(x1.shape[0], *batch_shape)
    return jnp.moveaxis(res, 0, 1)                   # (m0, m1)


if __name__ == "__main__":
    key = jax.random.PRNGKey(0)
    kv, ka, kb = jax.random.split(key, 3)
    # nn.Parameter(torch.zeros(Ns)) — deterministically filled with random
    # values here so the forward pass is non-trivial (synthetic init).
    values = jax.random.normal(kv, tuple(NS), dtype=jnp.float32)
    x0 = jax.random.uniform(ka, (M_EVAL[0],), minval=DOMAINS[0][0],
                            maxval=DOMAINS[0][1], dtype=jnp.float32)
    x1 = jax.random.uniform(kb, (M_EVAL[1],), minval=DOMAINS[1][0],
                            maxval=DOMAINS[1][1], dtype=jnp.float32)

    consts = _setup_constants()
    fwd = jax.jit(spectral_interpolation_forward)
    out = jax.block_until_ready(fwd(values, [x0, x1], consts))

    ref = reference_forward(values, [x0, x1], consts)
    assert out.shape == (M_EVAL[0], M_EVAL[1])
    if not jnp.allclose(out, ref, atol=2e-3, rtol=2e-3):
        raise AssertionError(
            f"mismatch: max abs err = {float(jnp.max(jnp.abs(out - ref)))}")
    print("KERNEL_OK")
</pallas_src>

<mosaic_0001>
module attributes {stable_mosaic.version = 11 : i64} {
  func.func @_spectral_kernel(%arg0: memref<16x16xf32, #tpu.memory_space<vmem>>, %arg1: memref<32x19xf32, #tpu.memory_space<vmem>>, %arg2: memref<16x32xf32, #tpu.memory_space<vmem>>, %arg3: memref<8x8xf32, #tpu.memory_space<vmem>>) attributes {dimension_semantics = [], scalar_prefetch = 0 : i64, scratch_operands = 0 : i64, tpu.core_type = #tpu.core_type<tc>} {
    %c0 = arith.constant 0 : index
    %c0_0 = arith.constant 0 : index
    %0 = vector.load %arg1[%c0, %c0_0] : memref<32x19xf32, #tpu.memory_space<vmem>>, vector<1x16xf32>
    %c1 = arith.constant 1 : index
    %c0_1 = arith.constant 0 : index
    %1 = vector.load %arg1[%c1, %c0_1] : memref<32x19xf32, #tpu.memory_space<vmem>>, vector<1x16xf32>
    %c2 = arith.constant 2 : index
    %c0_2 = arith.constant 0 : index
    %2 = vector.load %arg1[%c2, %c0_2] : memref<32x19xf32, #tpu.memory_space<vmem>>, vector<1x8xf32>
    %c0_3 = arith.constant 0 : index
    %c16 = arith.constant 16 : index
    %3 = vector.load %arg1[%c0_3, %c16] : memref<32x19xf32, #tpu.memory_space<vmem>>, vector<32x1xf32>
    %c0_4 = arith.constant 0 : index
    %c17 = arith.constant 17 : index
    %4 = vector.load %arg1[%c0_4, %c17] : memref<32x19xf32, #tpu.memory_space<vmem>>, vector<32x1xf32>
    %c0_5 = arith.constant 0 : index
    %c18 = arith.constant 18 : index
    %5 = vector.load %arg1[%c0_5, %c18] : memref<32x19xf32, #tpu.memory_space<vmem>>, vector<8x1xf32>
    %cst = arith.constant 0.000000e+00 : f32
    %6 = vector.broadcast %cst : f32 to vector<8x1xf32>
    %7 = arith.subf %5, %6 : vector<8x1xf32>
    %cst_6 = arith.constant 2.000000e+00 : f32
    %8 = vector.broadcast %cst_6 : f32 to vector<8x1xf32>
    %9 = arith.mulf %8, %7 : vector<8x1xf32>
    %cst_7 = arith.constant 2.000000e+00 : f32
    %10 = vector.broadcast %cst_7 : f32 to vector<8x1xf32>
    %11 = arith.divf %9, %10 : vector<8x1xf32>
    %cst_8 = arith.constant 1.000000e+00 : f32
    %12 = vector.broadcast %cst_8 : f32 to vector<8x1xf32>
    %13 = arith.subf %11, %12 : vector<8x1xf32>
    %14 = vector.broadcast %13 : vector<8x1xf32> to vector<8x16xf32>
    %15 = vector.broadcast %0 : vector<1x16xf32> to vector<8x16xf32>
    %16 = arith.subf %14, %15 : vector<8x16xf32>
    %17 = math.absf %16 : vector<8x16xf32>
    %cst_9 = arith.constant 9.99999982E-15 : f32
    %18 = vector.broadcast %cst_9 : f32 to vector<8x16xf32>
    %19 = arith.cmpf olt, %17, %18 : vector<8x16xf32>
    %20 = arith.extui %19 : vector<8x16xi1> to vector<8x16xi32>
    %21 = arith.sitofp %20 : vector<8x16xi32> to vector<8x16xf32>
    %cst_10 = arith.constant dense<0xFF800000> : vector<8xf32>
    %22 = vector.multi_reduction <maximumf>, %21, %cst_10 [1] : vector<8x16xf32> to vector<8xf32>
    %23 = vector.shape_cast %22 : vector<8xf32> to vector<8x1xf32>
    %cst_11 = arith.constant 5.000000e-01 : f32
    %24 = vector.broadcast %cst_11 : f32 to vector<8x1xf32>
    %25 = arith.cmpf ogt, %23, %24 : vector<8x1xf32>
    %cst_12 = arith.constant 1.000000e+00 : f32
    %26 = vector.broadcast %cst_12 : f32 to vector<8x16xf32>
    %27 = arith.divf %26, %16 : vector<8x16xf32>
    %cst_13 = arith.constant 0.000000e+00 : f32
    %28 = vector.broadcast %cst_13 : f32 to vector<8x16xf32>
    %29 = vector.shape_cast %25 : vector<8x1xi1> to vector<8x1xi1>
    %30 = vector.broadcast %29 : vector<8x1xi1> to vector<8x16xi1>
    %31 = arith.select %30, %28, %27 : vector<8x16xi1>, vector<8x16xf32>
    %cst_14 = arith.constant 1.000000e+00 : f32
    %32 = vector.broadcast %cst_14 : f32 to vector<8x16xf32>
    %33 = arith.select %19, %32, %31 : vector<8x16xi1>, vector<8x16xf32>
    %34 = vector.broadcast %1 : vector<1x16xf32> to vector<8x16xf32>
    %35 = arith.mulf %33, %34 : vector<8x16xf32>
    %c0_15 = arith.constant 0 : index
    %c0_16 = arith.constant 0 : index
    %36 = vector.load %arg0[%c0_15, %c0_16] : memref<16x16xf32, #tpu.memory_space<vmem>>, vector<16x16xf32>
    %cst_17 = arith.constant dense<0.000000e+00> : vector<8x16xf32>
    %37 = tpu.matmul %35, %36, %cst_17 {dimension_numbers = #tpu.dot_dimension_numbers<[1], [0], [0], [1], [0, 0, 1, 1], [], []>, precision = #tpu.contract_precision<fp32>} : vector<8x16xf32>, vector<16x16xf32>, vector<8x16xf32> -> vector<8x16xf32>
    %cst_18 = arith.constant dense<0.000000e+00> : vector<8xf32>
    %38 = vector.multi_reduction <add>, %35, %cst_18 [1] : vector<8x16xf32> to vector<8xf32>
    %39 = vector.shape_cast %38 : vector<8xf32> to vector<8x1xf32>
    %cst_19 = arith.constant 1.000000e+00 : f32
    %40 = vector.broadcast %cst_19 : f32 to vector<8x1xf32>
    %41 = arith.divf %40, %39 : vector<8x1xf32>
    %cst_20 = arith.constant 0.000000e+00 : f32
    %42 = vector.broadcast %cst_20 : f32 to vector<1x8xf32>
    %43 = arith.subf %2, %42 : vector<1x8xf32>
    %cst_21 = arith.constant 6.28318548 : f32
    %44 = vector.broadcast %cst_21 : f32 to vector<1x8xf32>
    %45 = arith.mulf %44, %43 : vector<1x8xf32>
    %cst_22 = arith.constant 1.000000e+00 : f32
    %46 = vector.broadcast %cst_22 : f32 to vector<1x8xf32>
    %47 = arith.divf %45, %46 : vector<1x8xf32>
    %48 = vector.broadcast %3 : vector<32x1xf32> to vector<32x8xf32>
    %49 = vector.broadcast %47 : vector<1x8xf32> to vector<32x8xf32>
    %50 = arith.mulf %48, %49 : vector<32x8xf32>
    %51 = vector.broadcast %4 : vector<32x1xf32> to vector<32x8xf32>
    %52 = arith.subf %50, %51 : vector<32x8xf32>
    %53 = math.cos %52 : vector<32x8xf32>
    %c0_23 = arith.constant 0 : index
    %c0_24 = arith.constant 0 : index
    %54 = vector.load %arg2[%c0_23, %c0_24] : memref<16x32xf32, #tpu.memory_space<vmem>>, vector<16x32xf32>
    %cst_25 = arith.constant dense<0.000000e+00> : vector<16x8xf32>
    %55 = tpu.matmul %54, %53, %cst_25 {dimension_numbers = #tpu.dot_dimension_numbers<[1], [0], [0], [1], [0, 0, 1, 1], [], []>, precision = #tpu.contract_precision<fp32>} : vector<16x32xf32>, vector<32x8xf32>, vector<16x8xf32> -> vector<16x8xf32>
    %56 = vector.broadcast %41 : vector<8x1xf32> to vector<8x16xf32>
    %57 = arith.mulf %37, %56 : vector<8x16xf32>
    %cst_26 = arith.constant dense<0.000000e+00> : vector<8x8xf32>
    %58 = tpu.matmul %57, %55, %cst_26 {dimension_numbers = #tpu.dot_dimension_numbers<[1], [0], [0], [1], [0, 0, 1, 1], [], []>, precision = #tpu.contract_precision<fp32>} : vector<8x16xf32>, vector<16x8xf32>, vector<8x8xf32> -> vector<8x8xf32>
    %c0_27 = arith.constant 0 : index
    %c0_28 = arith.constant 0 : index
    %59 = vector.load %arg3[%c0_27, %c0_28] : memref<8x8xf32, #tpu.memory_space<vmem>>, vector<8x8xf32>
    tpu.vector_store %arg3[%c0_27, %c0_28], %58 {strides = array<i32>} : memref<8x8xf32, #tpu.memory_space<vmem>>, vector<8x8xf32>,
    return
  }
}

</mosaic_0001>

<llo_original>
// kernel: spectral_interpolation_forward.1
$region0: #{spectral_interpolation_forward.1}
  #allocation0 [shape = 'u32[]', space=smem, size = 0x4, offset = 0x4, fixed_abs, tag = 'smem constant byte address 0x4 - core index']
  #allocation1 [shape = 'u32[144,128]{1,0:T(1,128)}', space=vmem, size = 0x12000, scoped, tag = 'internal scratch']
  %s0 = inlined_call_operand.vmem [shape: f32[16,16], index: 0, kind: input, shape index: {}]
  %s1 = inlined_call_operand.vmem [shape: f32[32,19], index: 1, kind: input, shape index: {}]
  %s2 = inlined_call_operand.vmem [shape: f32[16,32], index: 2, kind: input, shape index: {}]
  %s3 = inlined_call_operand.hbm [shape: f32[8,8], index: 3, kind: output, shape index: {}]
  %s4 = sld [smem:[#allocation0]]
  $region22: #{spectral_interpolation_forward.1} parent=0
    _
  %s6 = ssub.s32 1, %s4
  %s7 = scalar_select 0, %s6, %s4
  $region1: #{spectral_interpolation_forward.1} parent=0
    #allocation2 [shape = 'u8[4096]{0}', space=vmem, size = 0x1000, scoped, tag = 'output window, operand 0, single buffered']
    #allocation3 [shape = 's32[1]{0}', space=sflag, size = 0x4, scoped, tag = 'scoped memory for spectral_interpolation_forward.1']
    %8 = vsyncpa [#allocation3], 0
    // Predicated region
    $region2: #{spectral_interpolation_forward.1} parent=1 // pred_check
      _
    $region3: #{spectral_interpolation_forward.1} parent=1 // pred_check_branch
      %10 = sbr.rel (0) target = $region5
    $region4: #{spectral_interpolation_forward.1} parent=1 // pred_region
      _
    $region5: #{spectral_interpolation_forward.1} parent=1 // pred_fallthru
      _
    // Predicated region
    $region6: #{spectral_interpolation_forward.1} parent=1 // pred_check
      _
    $region7: #{spectral_interpolation_forward.1} parent=1 // pred_check_branch
      %12 = sbr.rel (0) target = $region9
    $region8: #{spectral_interpolation_forward.1} parent=1 // pred_region
      _
    $region9: #{spectral_interpolation_forward.1} parent=1 // pred_fallthru
      _
    // Predicated region
    $region10: #{spectral_interpolation_forward.1} parent=1 // pred_check
      _
    $region11: #{spectral_interpolation_forward.1} parent=1 // pred_check_branch
      %14 = sbr.rel (0) target = $region13
    $region12: #{spectral_interpolation_forward.1} parent=1 // pred_region
      _
    $region13: #{spectral_interpolation_forward.1} parent=1 // pred_fallthru
      _
    %v15 = vld [vmem:[%s1] sm:$0x1]
    %v16 = vld [vmem:[%s1 + $0x1] sm:$0x1]
    %v17 = vld [vmem:[%s1 + $0x2] sm:$0x1]
    %v18 = vld [vmem:[%s1] sm:$0xff]
    %v19 = vld [vmem:[%s1 + $0x8] sm:$0xff]
    %v20 = vld [vmem:[%s1 + $0x10] sm:$0xff]
    %v21 = vld [vmem:[%s1 + $0x18] sm:$0xff]
    %v22 = vmul.f32 %v18, 2.0
    %v23 = vrcp.pop 2.0
    %v24 = vmul.f32 %v22, %v23
    %v25 = vsub.f32 %v24, 1.0
    %27 = vset.pattern.permute.xlu0 18
    %28 = vperm.xlu0 %27, %v25
    %v29 = vpop.permute.xlu0 %28
    %v31 = vlaneseq
    %v32 = vshrl.u32 %v31, 7
    %v33 = vsub.s32 0, %v32
    %v34 = vrot.slane %v15, %v33
    %v35 = vsub.f32 %v29, %v34
    %v36 = vand.u32 2147483647, %v35
    %vm37 = vcmp.lt.f32.partialorder %v36, 1e-14
    %v38 = vsel %vm37, 1, 0
    %v39 = vcvt.s32.f32 %v38
    %vm40 = vcmask 130048
    %v41 = vsel %vm40, %v39, -inf
    %42 = vmax.xlane.f32.xlu0 %v41
    %v43 = vpop.xlane.xlu0 %42
    %vm44 = vcmp.gt.f32.partialorder %v43, 0.5
    %v45 = vrcp.pop %v35
    %v46 = vmul.f32 1.0, %v45
    %v47 = vsel %vm44, 1, 0
    %vm48 = vcmp.eq.s32.totalorder %v47, 1
    %v49 = vsel %vm48, 0.0, %v46
    %v50 = vsel %vm37, 1.0, %v49
    %v51 = vlaneseq
    %v52 = vshrl.u32 %v51, 7
    %v53 = vsub.s32 0, %v52
    %v54 = vrot.slane %v16, %v53
    %v55 = vmul.f32 %v50, %v54
    %v56 = vld [vmem:[%s0] sm:$0xff]
    %v57 = vld [vmem:[%s0 + $0x8] sm:$0xff]
    %v59 = vsel %vm40, %v55, 0
    %61 = vmatprep.subr.mxu0 0.0
    %v62 = vand.u32 %v56, 4294901760
    %63 = vmatpush1.msra.mxu0 %v62
    %64 = vmatprep.subr.mxu0 0.0
    %v65 = vand.u32 %v57, 4294901760
    %66 = vmatpush1.msra.mxu0 %v65
    %67 = vmatprep.subr.mxu0 0.0
    %68 = vmatpush1.msra.mxu0 0.0
    %69 = vmatprep.subr.mxu0 0.0
    %70 = vmatpush1.msra.mxu0 0.0
    %71 = vmatprep.subr.mxu0 0.0
    %72 = vmatpush1.msra.mxu0 0.0
    %73 = vmatprep.subr.mxu0 0.0
    %74 = vmatpush1.msra.mxu0 0.0
    %75 = vmatprep.subr.mxu0 0.0
    %76 = vmatpush1.msra.mxu0 0.0
    %77 = vmatprep.subr.mxu0 0.0
    %78 = vmatpush1.msra.mxu0 0.0
    %79 = vmatprep.subr.mxu0 0.0
    %80 = vmatpush1.msra.mxu0 0.0
    %81 = vmatprep.subr.mxu0 0.0
    %82 = vmatpush1.msra.mxu0 0.0
    %83 = vmatprep.subr.mxu0 0.0
    %84 = vmatpush1.msra.mxu0 0.0
    %85 = vmatprep.subr.mxu0 0.0
    %86 = vmatpush1.msra.mxu0 0.0
    %87 = vmatprep.subr.mxu0 0.0
    %88 = vmatpush1.msra.mxu0 0.0
    %89 = vmatprep.subr.mxu0 0.0
    %90 = vmatpush1.msra.mxu0 0.0
    %91 = vmatprep.subr.mxu0 0.0
    %92 = vmatpush1.msra.mxu0 0.0
    %93 = vmatprep.subr.mxu0 0.0
    %94 = vmatpush1.msra.mxu0 0.0
    %95 = vmatprep.subr.mxu0 0.0
    %96 = vmatpush1.msra.mxu0 0.0
    %97 = vmatprep.subr.mxu0 0.0
    %98 = vmatpush1.msra.mxu0 0.0
    %99 = vmatprep.subr.mxu0 0.0
    %100 = vmatpush1.msra.mxu0 0.0
    %101 = vmatprep.subr.mxu0 0.0
    %102 = vmatpush1.msra.mxu0 0.0
    %103 = vmatprep.subr.mxu0 0.0
    %104 = vmatpush1.msra.mxu0 0.0
    %105 = vmatprep.subr.mxu0 0.0
    %106 = vmatpush1.msra.mxu0 0.0
    %107 = vmatprep.subr.mxu0 0.0
    %108 = vmatpush1.msra.mxu0 0.0
    %109 = vmatprep.subr.mxu0 0.0
    %110 = vmatpush1.msra.mxu0 0.0
    %111 = vmatprep.subr.mxu0 0.0
    %112 = vmatpush1.msra.mxu0 0.0
    %113 = vmatprep.subr.mxu0 0.0
    %114 = vmatpush1.msra.mxu0 0.0
    %115 = vmatprep.subr.mxu0 0.0
    %116 = vmatpush1.msra.mxu0 0.0
    %117 = vmatprep.subr.mxu0 0.0
    %118 = vmatpush1.msra.mxu0 0.0
    %119 = vmatprep.subr.mxu0 0.0
    %120 = vmatpush1.msra.mxu0 0.0
    %121 = vmatprep.subr.mxu0 0.0
    %122 = vmatpush1.msra.mxu0 0.0
    %123 = vmatprep.subr.mxu0 0.0
    %124 = vmatpush1.msra.mxu0 0.0
    %125 = vmatprep.subr.mxu0 0.0
    %126 = vmatpush1.msra.mxu0 0.0
    %127 = vmatprep.mubr.f32.mxu0 0.0
    %v128 = vand.u32 %v59, 4294901760
    %v129 = vsub.f32 %v59, %v128
    %v130 = vand.u32 %v129, 4294901760
    %v131 = vsub.f32 %v129, %v130
    %v132 = vand.u32 %v131, 4294901760
    %133 = vmatmul.mubr.f32.gmra.mrb[0].mxu0 %v132
    %v134 = vpop.f32.mrb[0].mxu0
    %v135 = vadd.f32 0.0, %v134
    %v136 = vpop.f32.mrb[0].mxu0
    %137 = vdwg.mxu0
    %138 = vmatprep.subr.mxu0 0.0
    %v139 = vand.u32 %v56, 4294901760
    %v140 = vsub.f32 %v56, %v139
    %v141 = vand.u32 %v140, 4294901760
    %v142 = vsub.f32 %v140, %v141
    %v143 = vand.u32 %v142, 4294901760
    %144 = vmatpush1.msra.mxu0 %v143
    %145 = vmatprep.subr.mxu0 0.0
    %v146 = vand.u32 %v57, 4294901760
    %v147 = vsub.f32 %v57, %v146
    %v148 = vand.u32 %v147, 4294901760
    %v149 = vsub.f32 %v147, %v148
    %v150 = vand.u32 %v149, 4294901760
    %151 = vmatpush1.msra.mxu0 %v150
    %152 = vmatprep.subr.mxu0 0.0
    %153 = vmatpush1.msra.mxu0 0.0
    %154 = vmatprep.subr.mxu0 0.0
    %155 = vmatpush1.msra.mxu0 0.0
    %156 = vmatprep.subr.mxu0 0.0
    %157 = vmatpush1.msra.mxu0 0.0
    %158 = vmatprep.subr.mxu0 0.0
    %159 = vmatpush1.msra.mxu0 0.0
    %160 = vmatprep.subr.mxu0 0.0
    %161 = vmatpush1.msra.mxu0 0.0
    %162 = vmatprep.subr.mxu0 0.0
    %163 = vmatpush1.msra.mxu0 0.0
    %164 = vmatprep.subr.mxu0 0.0
    %165 = vmatpush1.msra.mxu0 0.0
    %166 = vmatprep.subr.mxu0 0.0
    %167 = vmatpush1.msra.mxu0 0.0
    %168 = vmatprep.subr.mxu0 0.0
    %169 = vmatpush1.msra.mxu0 0.0
    %170 = vmatprep.subr.mxu0 0.0
    %171 = vmatpush1.msra.mxu0 0.0
    %172 = vmatprep.subr.mxu0 0.0
    %173 = vmatpush1.msra.mxu0 0.0
    %174 = vmatprep.subr.mxu0 0.0
    %175 = vmatpush1.msra.mxu0 0.0
    %176 = vmatprep.subr.mxu0 0.0
    %177 = vmatpush1.msra.mxu0 0.0
    %178 = vmatprep.subr.mxu0 0.0
    %179 = vmatpush1.msra.mxu0 0.0
    %180 = vmatprep.subr.mxu0 0.0
    %181 = vmatpush1.msra.mxu0 0.0
    %182 = vmatprep.subr.mxu0 0.0
    %183 = vmatpush1.msra.mxu0 0.0
    %184 = vmatprep.subr.mxu0 0.0
    %185 = vmatpush1.msra.mxu0 0.0
    %186 = vmatprep.subr.mxu0 0.0
    %187 = vmatpush1.msra.mxu0 0.0
    %188 = vmatprep.subr.mxu0 0.0
    %189 = vmatpush1.msra.mxu0 0.0
    %190 = vmatprep.subr.mxu0 0.0
    %191 = vmatpush1.msra.mxu0 0.0
    %192 = vmatprep.subr.mxu0 0.0
    %193 = vmatpush1.msra.mxu0 0.0
    %194 = vmatprep.subr.mxu0 0.0
    %195 = vmatpush1.msra.mxu0 0.0
    %196 = vmatprep.subr.mxu0 0.0
    %197 = vmatpush1.msra.mxu0 0.0
    %198 = vmatprep.subr.mxu0 0.0
    %199 = vmatpush1.msra.mxu0 0.0
    %200 = vmatprep.subr.mxu0 0.0
    %201 = vmatpush1.msra.mxu0 0.0
    %202 = vmatprep.subr.mxu0 0.0
    %203 = vmatpush1.msra.mxu0 0.0
    %204 = vmatprep.subr.mxu0 0.0
    %205 = vmatpush1.msra.mxu0 0.0
    %206 = vmatprep.subr.mxu0 0.0
    %207 = vmatpush1.msra.mxu0 0.0
    %208 = vmatprep.subr.mxu0 0.0
    %209 = vmatpush1.msra.mxu0 0.0
    %210 = vmatprep.subr.mxu0 0.0
    %211 = vmatpush1.msra.mxu0 0.0
    %212 = vmatprep.mubr.f32.mxu0 0.0
    %v213 = vand.u32 %v59, 4294901760
    %214 = vmatmul.mubr.f32.gmra.mrb[0].mxu0 %v213
    %v215 = vpop.f32.mrb[0].mxu0
    %v216 = vadd.f32 %v135, %v215
    %v217 = vpop.f32.mrb[0].mxu0
    %218 = vdwg.mxu0
    %219 = vmatprep.subr.mxu0 0.0
    %v220 = vand.u32 %v56, 4294901760
    %v221 = vsub.f32 %v56, %v220
    %222 = vmatpush1.msra.mxu0 %v221
    %223 = vmatprep.subr.mxu0 0.0
    %v224 = vand.u32 %v57, 4294901760
    %v225 = vsub.f32 %v57, %v224
    %226 = vmatpush1.msra.mxu0 %v225
    %227 = vmatprep.subr.mxu0 0.0
    %228 = vmatpush1.msra.mxu0 0.0
    %229 = vmatprep.subr.mxu0 0.0
    %230 = vmatpush1.msra.mxu0 0.0
    %231 = vmatprep.subr.mxu0 0.0
    %232 = vmatpush1.msra.mxu0 0.0
    %233 = vmatprep.subr.mxu0 0.0
    %234 = vmatpush1.msra.mxu0 0.0
    %235 = vmatprep.subr.mxu0 0.0
    %236 = vmatpush1.msra.mxu0 0.0
    %237 = vmatprep.subr.mxu0 0.0
    %238 = vmatpush1.msra.mxu0 0.0
    %239 = vmatprep.subr.mxu0 0.0
    %240 = vmatpush1.msra.mxu0 0.0
    %241 = vmatprep.subr.mxu0 0.0
    %242 = vmatpush1.msra.mxu0 0.0
    %243 = vmatprep.subr.mxu0 0.0
    %244 = vmatpush1.msra.mxu0 0.0
    %245 = vmatprep.subr.mxu0 0.0
    %246 = vmatpush1.msra.mxu0 0.0
    %247 = vmatprep.subr.mxu0 0.0
    %248 = vmatpush1.msra.mxu0 0.0
    %249 = vmatprep.subr.mxu0 0.0
    %250 = vmatpush1.msra.mxu0 0.0
    %251 = vmatprep.subr.mxu0 0.0
    %252 = vmatpush1.msra.mxu0 0.0
    %253 = vmatprep.subr.mxu0 0.0
    %254 = vmatpush1.msra.mxu0 0.0
    %255 = vmatprep.subr.mxu0 0.0
    %256 = vmatpush1.msra.mxu0 0.0
    %257 = vmatprep.subr.mxu0 0.0
    %258 = vmatpush1.msra.mxu0 0.0
    %259 = vmatprep.subr.mxu0 0.0
    %260 = vmatpush1.msra.mxu0 0.0
    %261 = vmatprep.subr.mxu0 0.0
    %262 = vmatpush1.msra.mxu0 0.0
    %263 = vmatprep.subr.mxu0 0.0
    %264 = vmatpush1.msra.mxu0 0.0
    %265 = vmatprep.subr.mxu0 0.0
    %266 = vmatpush1.msra.mxu0 0.0
    %267 = vmatprep.subr.mxu0 0.0
    %268 = vmatpush1.msra.mxu0 0.0
    %269 = vmatprep.subr.mxu0 0.0
    %270 = vmatpush1.msra.mxu0 0.0
    %271 = vmatprep.subr.mxu0 0.0
    %272 = vmatpush1.msra.mxu0 0.0
    %273 = vmatprep.subr.mxu0 0.0
    %274 = vmatpush1.msra.mxu0 0.0
    %275 = vmatprep.subr.mxu0 0.0
    %276 = vmatpush1.msra.mxu0 0.0
    %277 = vmatprep.subr.mxu0 0.0
    %278 = vmatpush1.msra.mxu0 0.0
    %279 = vmatprep.subr.mxu0 0.0
    %280 = vmatpush1.msra.mxu0 0.0
    %281 = vmatprep.subr.mxu0 0.0
    %282 = vmatpush1.msra.mxu0 0.0
    %283 = vmatprep.subr.mxu0 0.0
    %284 = vmatpush1.msra.mxu0 0.0
    %285 = vmatprep.subr.mxu0 0.0
    %286 = vmatpush1.msra.mxu0 0.0
    %287 = vmatprep.mubr.f32.mxu0 0.0
    %v288 = vand.u32 %v59, 4294901760
    %v289 = vsub.f32 %v59, %v288
    %290 = vmatmul.mubr.f32.gmra.mrb[0].mxu0 %v289
    %v291 = vpop.f32.mrb[0].mxu0
    %v292 = vadd.f32 %v216, %v291
    %v293 = vpop.f32.mrb[0].mxu0
    %294 = vdwg.mxu0
    %295 = vmatprep.subr.mxu0 0.0
    %v296 = vand.u32 %v56, 4294901760
    %297 = vmatpush1.msra.mxu0 %v296
    %298 = vmatprep.subr.mxu0 0.0
    %v299 = vand.u32 %v57, 4294901760
    %300 = vmatpush1.msra.mxu0 %v299
    %301 = vmatprep.subr.mxu0 0.0
    %302 = vmatpush1.msra.mxu0 0.0
    %303 = vmatprep.subr.mxu0 0.0
    %304 = vmatpush1.msra.mxu0 0.0
    %305 = vmatprep.subr.mxu0 0.0
    %306 = vmatpush1.msra.mxu0 0.0
    %307 = vmatprep.subr.mxu0 0.0
    %308 = vmatpush1.msra.mxu0 0.0
    %309 = vmatprep.subr.mxu0 0.0
    %310 = vmatpush1.msra.mxu0 0.0
    %311 = vmatprep.subr.mxu0 0.0
    %312 = vmatpush1.msra.mxu0 0.0
    %313 = vmatprep.subr.mxu0 0.0
    %314 = vmatpush1.msra.mxu0 0.0
    %315 = vmatprep.subr.mxu0 0.0
    %316 = vmatpush1.msra.mxu0 0.0
    %317 = vmatprep.subr.mxu0 0.0
    %318 = vmatpush1.msra.mxu0 0.0
    %319 = vmatprep.subr.mxu0 0.0
    %320 = vmatpush1.msra.mxu0 0.0
    %321 = vmatprep.subr.mxu0 0.0
    %322 = vmatpush1.msra.mxu0 0.0
    %323 = vmatprep.subr.mxu0 0.0
    %324 = vmatpush1.msra.mxu0 0.0
    %325 = vmatprep.subr.mxu0 0.0
    %326 = vmatpush1.msra.mxu0 0.0
    %327 = vmatprep.subr.mxu0 0.0
    %328 = vmatpush1.msra.mxu0 0.0
    %329 = vmatprep.subr.mxu0 0.0
    %330 = vmatpush1.msra.mxu0 0.0
    %331 = vmatprep.subr.mxu0 0.0
    %332 = vmatpush1.msra.mxu0 0.0
    %333 = vmatprep.subr.mxu0 0.0
    %334 = vmatpush1.msra.mxu0 0.0
    %335 = vmatprep.subr.mxu0 0.0
    %336 = vmatpush1.msra.mxu0 0.0
    %337 = vmatprep.subr.mxu0 0.0
    %338 = vmatpush1.msra.mxu0 0.0
    %339 = vmatprep.subr.mxu0 0.0
    %340 = vmatpush1.msra.mxu0 0.0
    %341 = vmatprep.subr.mxu0 0.0
    %342 = vmatpush1.msra.mxu0 0.0
    %343 = vmatprep.subr.mxu0 0.0
    %344 = vmatpush1.msra.mxu0 0.0
    %345 = vmatprep.subr.mxu0 0.0
    %346 = vmatpush1.msra.mxu0 0.0
    %347 = vmatprep.subr.mxu0 0.0
    %348 = vmatpush1.msra.mxu0 0.0
    %349 = vmatprep.subr.mxu0 0.0
    %350 = vmatpush1.msra.mxu0 0.0
    %351 = vmatprep.subr.mxu0 0.0
    %352 = vmatpush1.msra.mxu0 0.0
    %353 = vmatprep.subr.mxu0 0.0
    %354 = vmatpush1.msra.mxu0 0.0
    %355 = vmatprep.subr.mxu0 0.0
    %356 = vmatpush1.msra.mxu0 0.0
    %357 = vmatprep.subr.mxu0 0.0
    %358 = vmatpush1.msra.mxu0 0.0
    %359 = vmatprep.subr.mxu0 0.0
    %360 = vmatpush1.msra.mxu0 0.0
    %361 = vmatprep.mubr.f32.mxu0 0.0
    %v362 = vand.u32 %v59, 4294901760
    %v363 = vsub.f32 %v59, %v362
    %v364 = vand.u32 %v363, 4294901760
    %365 = vmatmul.mubr.f32.gmra.mrb[0].mxu0 %v364
    %v366 = vpop.f32.mrb[0].mxu0
    %v367 = vadd.f32 %v292, %v366
    %v368 = vpop.f32.mrb[0].mxu0
    %369 = vdwg.mxu0
    %370 = vmatprep.subr.mxu0 0.0
    %v371 = vand.u32 %v56, 4294901760
    %v372 = vsub.f32 %v56, %v371
    %v373 = vand.u32 %v372, 4294901760
    %374 = vmatpush1.msra.mxu0 %v373
    %375 = vmatprep.subr.mxu0 0.0
    %v376 = vand.u32 %v57, 4294901760
    %v377 = vsub.f32 %v57, %v376
    %v378 = vand.u32 %v377, 4294901760
    %379 = vmatpush1.msra.mxu0 %v378
    %380 = vmatprep.subr.mxu0 0.0
    %381 = vmatpush1.msra.mxu0 0.0
    %382 = vmatprep.subr.mxu0 0.0
    %383 = vmatpush1.msra.mxu0 0.0
    %384 = vmatprep.subr.mxu0 0.0
    %385 = vmatpush1.msra.mxu0 0.0
    %386 = vmatprep.subr.mxu0 0.0
    %387 = vmatpush1.msra.mxu0 0.0
    %388 = vmatprep.subr.mxu0 0.0
    %389 = vmatpush1.msra.mxu0 0.0
    %390 = vmatprep.subr.mxu0 0.0
    %391 = vmatpush1.msra.mxu0 0.0
    %392 = vmatprep.subr.mxu0 0.0
    %393 = vmatpush1.msra.mxu0 0.0
    %394 = vmatprep.subr.mxu0 0.0
    %395 = vmatpush1.msra.mxu0 0.0
    %396 = vmatprep.subr.mxu0 0.0
    %397 = vmatpush1.msra.mxu0 0.0
    %398 = vmatprep.subr.mxu0 0.0
    %399 = vmatpush1.msra.mxu0 0.0
    %400 = vmatprep.subr.mxu0 0.0
    %401 = vmatpush1.msra.mxu0 0.0
    %402 = vmatprep.subr.mxu0 0.0
    %403 = vmatpush1.msra.mxu0 0.0
    %404 = vmatprep.subr.mxu0 0.0
    %405 = vmatpush1.msra.mxu0 0.0
    %406 = vmatprep.subr.mxu0 0.0
    %407 = vmatpush1.msra.mxu0 0.0
    %408 = vmatprep.subr.mxu0 0.0
    %409 = vmatpush1.msra.mxu0 0.0
    %410 = vmatprep.subr.mxu0 0.0
    %411 = vmatpush1.msra.mxu0 0.0
    %412 = vmatprep.subr.mxu0 0.0
    %413 = vmatpush1.msra.mxu0 0.0
    %414 = vmatprep.subr.mxu0 0.0
    %415 = vmatpush1.msra.mxu0 0.0
    %416 = vmatprep.subr.mxu0 0.0
    %417 = vmatpush1.msra.mxu0 0.0
    %418 = vmatprep.subr.mxu0 0.0
    %419 = vmatpush1.msra.mxu0 0.0
    %420 = vmatprep.subr.mxu0 0.0
    %421 = vmatpush1.msra.mxu0 0.0
    %422 = vmatprep.subr.mxu0 0.0
    %423 = vmatpush1.msra.mxu0 0.0
    %424 = vmatprep.subr.mxu0 0.0
    %425 = vmatpush1.msra.mxu0 0.0
    %426 = vmatprep.subr.mxu0 0.0
    %427 = vmatpush1.msra.mxu0 0.0
    %428 = vmatprep.subr.mxu0 0.0
    %429 = vmatpush1.msra.mxu0 0.0
    %430 = vmatprep.subr.mxu0 0.0
    %431 = vmatpush1.msra.mxu0 0.0
    %432 = vmatprep.subr.mxu0 0.0
    %433 = vmatpush1.msra.mxu0 0.0
    %434 = vmatprep.subr.mxu0 0.0
    %435 = vmatpush1.msra.mxu0 0.0
    %436 = vmatprep.subr.mxu0 0.0
    %437 = vmatpush1.msra.mxu0 0.0
    %438 = vmatprep.subr.mxu0 0.0
    %439 = vmatpush1.msra.mxu0 0.0
    %440 = vmatprep.mubr.f32.mxu0 0.0
    %v441 = vand.u32 %v59, 4294901760
    %442 = vmatmul.mubr.f32.gmra.mrb[0].mxu0 %v441
    %v443 = vpop.f32.mrb[0].mxu0
    %v444 = vadd.f32 %v367, %v443
    %v445 = vpop.f32.mrb[0].mxu0
    %446 = vdwg.mxu0
    %447 = vmatprep.subr.mxu0 0.0
    %v448 = vand.u32 %v56, 4294901760
    %449 = vmatpush1.msra.mxu0 %v448
    %450 = vmatprep.subr.mxu0 0.0
    %v451 = vand.u32 %v57, 4294901760
    %452 = vmatpush1.msra.mxu0 %v451
    %453 = vmatprep.subr.mxu0 0.0
    %454 = vmatpush1.msra.mxu0 0.0
    %455 = vmatprep.subr.mxu0 0.0
    %456 = vmatpush1.msra.mxu0 0.0
    %457 = vmatprep.subr.mxu0 0.0
    %458 = vmatpush1.msra.mxu0 0.0
    %459 = vmatprep.subr.mxu0 0.0
    %460 = vmatpush1.msra.mxu0 0.0
    %461 = vmatprep.subr.mxu0 0.0
    %462 = vmatpush1.msra.mxu0 0.0
    %463 = vmatprep.subr.mxu0 0.0
    %464 = vmatpush1.msra.mxu0 0.0
    %465 = vmatprep.subr.mxu0 0.0
    %466 = vmatpush1.msra.mxu0 0.0
    %467 = vmatprep.subr.mxu0 0.0
    %468 = vmatpush1.msra.mxu0 0.0
    %469 = vmatprep.subr.mxu0 0.0
    %470 = vmatpush1.msra.mxu0 0.0
    %471 = vmatprep.subr.mxu0 0.0
    %472 = vmatpush1.msra.mxu0 0.0
    %473 = vmatprep.subr.mxu0 0.0
    %474 = vmatpush1.msra.mxu0 0.0
    %475 = vmatprep.subr.mxu0 0.0
    %476 = vmatpush1.msra.mxu0 0.0
    %477 = vmatprep.subr.mxu0 0.0
    %478 = vmatpush1.msra.mxu0 0.0
    %479 = vmatprep.subr.mxu0 0.0
    %480 = vmatpush1.msra.mxu0 0.0
    %481 = vmatprep.subr.mxu0 0.0
    %482 = vmatpush1.msra.mxu0 0.0
    %483 = vmatprep.subr.mxu0 0.0
    %484 = vmatpush1.msra.mxu0 0.0
    %485 = vmatprep.subr.mxu0 0.0
    %486 = vmatpush1.msra.mxu0 0.0
    %487 = vmatprep.subr.mxu0 0.0
    %488 = vmatpush1.msra.mxu0 0.0
    %489 = vmatprep.subr.mxu0 0.0
    %490 = vmatpush1.msra.mxu0 0.0
    %491 = vmatprep.subr.mxu0 0.0
    %492 = vmatpush1.msra.mxu0 0.0
    %493 = vmatprep.subr.mxu0 0.0
    %494 = vmatpush1.msra.mxu0 0.0
    %495 = vmatprep.subr.mxu0 0.0
    %496 = vmatpush1.msra.mxu0 0.0
    %497 = vmatprep.subr.mxu0 0.0
    %498 = vmatpush1.msra.mxu0 0.0
    %499 = vmatprep.subr.mxu0 0.0
    %500 = vmatpush1.msra.mxu0 0.0
    %501 = vmatprep.subr.mxu0 0.0
    %502 = vmatpush1.msra.mxu0 0.0
    %503 = vmatprep.subr.mxu0 0.0
    %504 = vmatpush1.msra.mxu0 0.0
    %505 = vmatprep.subr.mxu0 0.0
    %506 = vmatpush1.msra.mxu0 0.0
    %507 = vmatprep.subr.mxu0 0.0
    %508 = vmatpush1.msra.mxu0 0.0
    %509 = vmatprep.subr.mxu0 0.0
    %510 = vmatpush1.msra.mxu0 0.0
    %511 = vmatprep.subr.mxu0 0.0
    %512 = vmatpush1.msra.mxu0 0.0
    %513 = vmatprep.mubr.f32.mxu0 0.0
    %v514 = vand.u32 %v59, 4294901760
    %515 = vmatmul.mubr.f32.gmra.mrb[0].mxu0 %v514
    %v516 = vpop.f32.mrb[0].mxu0
    %v517 = vadd.f32 %v444, %v516
    %v518 = vpop.f32.mrb[0].mxu0
    %519 = vdwg.mxu0
    %v520 = vsel %vm40, %v55, 0.0
    %521 = vadd.xlane.f32.xlu0 %v520
    %v522 = vpop.xlane.xlu0 %521
    %v523 = vrcp.pop %v522
    %v524 = vmul.f32 1.0, %v523
    %v525 = vmul.f32 %v17, 6.2831855
    %527 = vset.pattern.permute.xlu0 16
    %528 = vperm.xlu0 %527, %v18
    %v529 = vpop.permute.xlu0 %528
    %532 = vset.pattern.permute.xlu0 16
    %533 = vperm.xlu0 %532, %v19
    %v534 = vpop.permute.xlu0 %533
    %537 = vset.pattern.permute.xlu0 16
    %538 = vperm.xlu0 %537, %v20
    %v539 = vpop.permute.xlu0 %538
    %542 = vset.pattern.permute.xlu0 16
    %543 = vperm.xlu0 %542, %v21
    %v544 = vpop.permute.xlu0 %543
    %v546 = vlaneseq
    %v547 = vshrl.u32 %v546, 7
    %v548 = vsub.s32 0, %v547
    %v549 = vrot.slane %v525, %v548
    %v550 = vmul.f32 %v529, %v549
    %v551 = vmul.f32 %v534, %v549
    %v552 = vmul.f32 %v539, %v549
    %v553 = vmul.f32 %v544, %v549
    %554 = vset.pattern.permute.xlu0 17
    %555 = vperm.xlu0 %554, %v18
    %v556 = vpop.permute.xlu0 %555
    %558 = vset.pattern.permute.xlu0 17
    %559 = vperm.xlu0 %558, %v19
    %v560 = vpop.permute.xlu0 %559
    %562 = vset.pattern.permute.xlu0 17
    %563 = vperm.xlu0 %562, %v20
    %v564 = vpop.permute.xlu0 %563
    %566 = vset.pattern.permute.xlu0 17
    %567 = vperm.xlu0 %566, %v21
    %v568 = vpop.permute.xlu0 %567
    %v570 = vsub.f32 %v550, %v556
    %v571 = vsub.f32 %v551, %v560
    %v572 = vsub.f32 %v552, %v564
    %v573 = vsub.f32 %v553, %v568
    %v574 = vand.u32 2147483647, %v570
    %vm575 = vcmp.le.f32.partialorder %v574, 0.7853982
    %vm576 = vcmp.lt.s32.totalorder %v570, 0
    %v577 = vand.u32 %v570, 2139095040
    %v578 = vshrl.u32 %v577, 23
    %v579 = vsub.s32 %v578, 127
    %v580 = vand.u32 2147483647, %v570
    %v581 = vand.u32 %v580, 8388607
    %v582 = vor.u32 %v581, 8388608
    %v583 = vsub.s32 0, %v582
    %v584 = vadd.s32 %v579, 1
    %vm585 = vcmp.gt.s32.totalorder %v584, 0
    %v586 = vsel %vm585, %v584, 0
    %v587 = vshrl.u32 %v586, 5
    %v588 = vand.u32 %v586, 31
    %v589 = vsub.s32 32, %v588
    %v590 = vshrl.u32 683565275, %v589
    %v591 = vshll.u32 683565275, %v588
    %v592 = vshrl.u32 2475754826, %v589
    %v593 = vor.u32 %v591, %v592
    %v594 = vshll.u32 2475754826, %v588
    %v595 = vshrl.u32 2131351028, %v589
    %v596 = vor.u32 %v594, %v595
    %v597 = vshll.u32 2131351028, %v588
    %v598 = vshrl.u32 2102212464, %v589
    %v599 = vor.u32 %v597, %v598
    %v600 = vshll.u32 2102212464, %v588
    %v601 = vshrl.u32 920167782, %v589
    %v602 = vor.u32 %v600, %v601
    %v603 = vshll.u32 920167782, %v588
    %v604 = vshrl.u32 1326507024, %v589
    %v605 = vor.u32 %v603, %v604
    %vm606 = vcmp.lt.s32.totalorder %v587, 1
    %vm607 = vcmp.lt.s32.totalorder %v587, 2
    %vm608 = vcmp.lt.s32.totalorder %v587, 3
    %vm609 = vcmp.lt.s32.totalorder %v587, 4
    %v610 = vsel %vm606, %v590, %v593
    %v611 = vsel %vm609, %v599, 2102212464
    %v612 = vsel %vm608, %v596, %v611
    %v613 = vsel %vm607, %v610, %v612
    %v614 = vsel %vm606, %v593, %v596
    %v615 = vsel %vm609, %v602, 920167782
    %v616 = vsel %vm608, %v599, %v615
    %v617 = vsel %vm607, %v614, %v616
    %v618 = vsel %vm606, %v596, %v599
    %v619 = vsel %vm609, %v605, 1326507024
    %v620 = vsel %vm608, %v602, %v619
    %v621 = vsel %vm607, %v618, %v620
    %v622 = vshll.u32 %v582, 8
    %v623 = vmul.u32.u64.compose %v622, %v621
    %v624 = vextract.low.u32 %v623
    %v625 = vextract.high.u32 %v623
    %v626 = vmul.u32.u64.compose %v622, %v617
    %v627 = vextract.low.u32 %v626
    %v628 = vextract.high.u32 %v626
    %v629 = vmul.u32 %v622, %v613
    %v630 = vadd.s32 %v625, %v627
    %vm631 = vc.u32 %v625, %v627
    %v632 = vadd.s32 %v628, 1
    %v633 = vsel %vm631, %v632, %v628
    %v634 = vadd.s32 %v629, %v633
    %v635 = vadd.s32 %v634, 536870912
    %v636 = vshrl.u32 %v635, 30
    %v637 = vshll.u32 %v636, 30
    %v638 = vsub.s32 %v634, %v637
    %vm639 = vcmp.lt.s32.totalorder %v638, 0
    %v640 = vsub.s32 0, %v638
    %v641 = vsel %vm639, %v640, %v638
    %v642 = vclz %v641
    %v643 = vsub.s32 %v642, 2
    %vm644 = vcmp.gt.s32.totalorder 0, %v643
    %v645 = vsel %vm644, 0, %v643
    %v646 = vsub.s32 32, %v645
    %v647 = vshll.u32 %v638, %v645
    %v648 = vshrl.u32 %v630, %v646
    %v649 = vor.u32 %v647, %v648
    %v650 = vsub.s32 4294967266, %v645
    %v651 = vadd.s32 %v650, 127
    %v652 = vshll.u32 %v651, 23
    %v653 = vor.u32 4788187, %v652
    %v654 = vand.u32 2147483647, %v653
    %v656 = vcvt.s32.f32 %v649
    %v657 = vmul.f32 %v656, %v654
    %v658 = vxor.u32 %v657, 2147483648
    %v659 = vsel %vm576, %v658, %v657
    %v660 = vsub.s32 4, %v636
    %v661 = vsel %vm576, %v660, %v636
    %v662 = vsel %vm575, %v570, %v659
    %v663 = vsel %vm575, 0, %v661
    %v664 = vcosq.f32.pop %v662
    %v665 = vsinq.f32.pop %v662
    %vm666 = vweird.f32 %v570
    %v667 = vand.u32 %v663, 3
    %vm668 = vcmp.lt.s32.totalorder %v667, 2
    %vm669 = vcmp.eq.s32.totalorder %v667, 0
    %v670 = vxor.u32 %v665, 2147483648
    %v671 = vsel %vm669, %v664, %v670
    %vm672 = vcmp.eq.s32.totalorder %v667, 2
    %v673 = vxor.u32 %v664, 2147483648
    %v674 = vsel %vm672, %v673, %v665
    %v675 = vsel %vm668, %v671, %v674
    %v676 = vsel %vm666, nan, %v675
    %v677 = vand.u32 2147483647, %v571
    %vm678 = vcmp.le.f32.partialorder %v677, 0.7853982
    %vm679 = vcmp.lt.s32.totalorder %v571, 0
    %v680 = vand.u32 %v571, 2139095040
    %v681 = vshrl.u32 %v680, 23
    %v682 = vsub.s32 %v681, 127
    %v683 = vand.u32 2147483647, %v571
    %v684 = vand.u32 %v683, 8388607
    %v685 = vor.u32 %v684, 8388608
    %v686 = vsub.s32 0, %v685
    %v687 = vadd.s32 %v682, 1
    %vm688 = vcmp.gt.s32.totalorder %v687, 0
    %v689 = vsel %vm688, %v687, 0
    %v690 = vshrl.u32 %v689, 5
    %v691 = vand.u32 %v689, 31
    %v692 = vsub.s32 32, %v691
    %v693 = vshrl.u32 683565275, %v692
    %v694 = vshll.u32 683565275, %v691
    %v695 = vshrl.u32 2475754826, %v692
    %v696 = vor.u32 %v694, %v695
    %v697 = vshll.u32 2475754826, %v691
    %v698 = vshrl.u32 2131351028, %v692
    %v699 = vor.u32 %v697, %v698
    %v700 = vshll.u32 2131351028, %v691
    %v701 = vshrl.u32 2102212464, %v692
    %v702 = vor.u32 %v700, %v701
    %v703 = vshll.u32 2102212464, %v691
    %v704 = vshrl.u32 920167782, %v692
    %v705 = vor.u32 %v703, %v704
    %v706 = vshll.u32 920167782, %v691
    %v707 = vshrl.u32 1326507024, %v692
    %v708 = vor.u32 %v706, %v707
    %vm709 = vcmp.lt.s32.totalorder %v690, 1
    %vm710 = vcmp.lt.s32.totalorder %v690, 2
    %vm711 = vcmp.lt.s32.totalorder %v690, 3
    %vm712 = vcmp.lt.s32.totalorder %v690, 4
    %v713 = vsel %vm709, %v693, %v696
    %v714 = vsel %vm712, %v702, 2102212464
    %v715 = vsel %vm711, %v699, %v714
    %v716 = vsel %vm710, %v713, %v715
    %v717 = vsel %vm709, %v696, %v699
    %v718 = vsel %vm712, %v705, 920167782
    %v719 = vsel %vm711, %v702, %v718
    %v720 = vsel %vm710, %v717, %v719
    %v721 = vsel %vm709, %v699, %v702
    %v722 = vsel %vm712, %v708, 1326507024
    %v723 = vsel %vm711, %v705, %v722
    %v724 = vsel %vm710, %v721, %v723
    %v725 = vshll.u32 %v685, 8
    %v726 = vmul.u32.u64.compose %v725, %v724
    %v727 = vextract.low.u32 %v726
    %v728 = vextract.high.u32 %v726
    %v729 = vmul.u32.u64.compose %v725, %v720
    %v730 = vextract.low.u32 %v729
    %v731 = vextract.high.u32 %v729
    %v732 = vmul.u32 %v725, %v716
    %v733 = vadd.s32 %v728, %v730
    %vm734 = vc.u32 %v728, %v730
    %v735 = vadd.s32 %v731, 1
    %v736 = vsel %vm734, %v735, %v731
    %v737 = vadd.s32 %v732, %v736
    %v738 = vadd.s32 %v737, 536870912
    %v739 = vshrl.u32 %v738, 30
    %v740 = vshll.u32 %v739, 30
    %v741 = vsub.s32 %v737, %v740
    %vm742 = vcmp.lt.s32.totalorder %v741, 0
    %v743 = vsub.s32 0, %v741
    %v744 = vsel %vm742, %v743, %v741
    %v745 = vclz %v744
    %v746 = vsub.s32 %v745, 2
    %vm747 = vcmp.gt.s32.totalorder 0, %v746
    %v748 = vsel %vm747, 0, %v746
    %v749 = vsub.s32 32, %v748
    %v750 = vshll.u32 %v741, %v748
    %v751 = vshrl.u32 %v733, %v749
    %v752 = vor.u32 %v750, %v751
    %v753 = vsub.s32 4294967266, %v748
    %v754 = vadd.s32 %v753, 127
    %v755 = vshll.u32 %v754, 23
    %v756 = vor.u32 4788187, %v755
    %v757 = vand.u32 2147483647, %v756
    %v759 = vcvt.s32.f32 %v752
    %v760 = vmul.f32 %v759, %v757
    %v761 = vxor.u32 %v760, 2147483648
    %v762 = vsel %vm679, %v761, %v760
    %v763 = vsub.s32 4, %v739
    %v764 = vsel %vm679, %v763, %v739
    %v765 = vsel %vm678, %v571, %v762
    %v766 = vsel %vm678, 0, %v764
    %v767 = vcosq.f32.pop %v765
    %v768 = vsinq.f32.pop %v765
    %vm769 = vweird.f32 %v571
    %v770 = vand.u32 %v766, 3
    %vm771 = vcmp.lt.s32.totalorder %v770, 2
    %vm772 = vcmp.eq.s32.totalorder %v770, 0
    %v773 = vxor.u32 %v768, 2147483648
    %v774 = vsel %vm772, %v767, %v773
    %vm775 = vcmp.eq.s32.totalorder %v770, 2
    %v776 = vxor.u32 %v767, 2147483648
    %v777 = vsel %vm775, %v776, %v768
    %v778 = vsel %vm771, %v774, %v777
    %v779 = vsel %vm769, nan, %v778
    %v780 = vand.u32 2147483647, %v572
    %vm781 = vcmp.le.f32.partialorder %v780, 0.7853982
    %vm782 = vcmp.lt.s32.totalorder %v572, 0
    %v783 = vand.u32 %v572, 2139095040
    %v784 = vshrl.u32 %v783, 23
    %v785 = vsub.s32 %v784, 127
    %v786 = vand.u32 2147483647, %v572
    %v787 = vand.u32 %v786, 8388607
    %v788 = vor.u32 %v787, 8388608
    %v789 = vsub.s32 0, %v788
    %v790 = vadd.s32 %v785, 1
    %vm791 = vcmp.gt.s32.totalorder %v790, 0
    %v792 = vsel %vm791, %v790, 0
    %v793 = vshrl.u32 %v792, 5
    %v794 = vand.u32 %v792, 31
    %v795 = vsub.s32 32, %v794
    %v796 = vshrl.u32 683565275, %v795
    %v797 = vshll.u32 683565275, %v794
    %v798 = vshrl.u32 2475754826, %v795
    %v799 = vor.u32 %v797, %v798
    %v800 = vshll.u32 2475754826, %v794
    %v801 = vshrl.u32 2131351028, %v795
    %v802 = vor.u32 %v800, %v801
    %v803 = vshll.u32 2131351028, %v794
    %v804 = vshrl.u32 2102212464, %v795
    %v805 = vor.u32 %v803, %v804
    %v806 = vshll.u32 2102212464, %v794
    %v807 = vshrl.u32 920167782, %v795
    %v808 = vor.u32 %v806, %v807
    %v809 = vshll.u32 920167782, %v794
    %v810 = vshrl.u32 1326507024, %v795
    %v811 = vor.u32 %v809, %v810
    %vm812 = vcmp.lt.s32.totalorder %v793, 1
    %vm813 = vcmp.lt.s32.totalorder %v793, 2
    %vm814 = vcmp.lt.s32.totalorder %v793, 3
    %vm815 = vcmp.lt.s32.totalorder %v793, 4
    %v816 = vsel %vm812, %v796, %v799
    %v817 = vsel %vm815, %v805, 2102212464
    %v818 = vsel %vm814, %v802, %v817
    %v819 = vsel %vm813, %v816, %v818
    %v820 = vsel %vm812, %v799, %v802
    %v821 = vsel %vm815, %v808, 920167782
    %v822 = vsel %vm814, %v805, %v821
    %v823 = vsel %vm813, %v820, %v822
    %v824 = vsel %vm812, %v802, %v805
    %v825 = vsel %vm815, %v811, 1326507024
    %v826 = vsel %vm814, %v808, %v825
    %v827 = vsel %vm813, %v824, %v826
    %v828 = vshll.u32 %v788, 8
    %v829 = vmul.u32.u64.compose %v828, %v827
    %v830 = vextract.low.u32 %v829
    %v831 = vextract.high.u32 %v829
    %v832 = vmul.u32.u64.compose %v828, %v823
    %v833 = vextract.low.u32 %v832
    %v834 = vextract.high.u32 %v832
    %v835 = vmul.u32 %v828, %v819
    %v836 = vadd.s32 %v831, %v833
    %vm837 = vc.u32 %v831, %v833
    %v838 = vadd.s32 %v834, 1
    %v839 = vsel %vm837, %v838, %v834
    %v840 = vadd.s32 %v835, %v839
    %v841 = vadd.s32 %v840, 536870912
    %v842 = vshrl.u32 %v841, 30
    %v843 = vshll.u32 %v842, 30
    %v844 = vsub.s32 %v840, %v843
    %vm845 = vcmp.lt.s32.totalorder %v844, 0
    %v846 = vsub.s32 0, %v844
    %v847 = vsel %vm845, %v846, %v844
    %v848 = vclz %v847
    %v849 = vsub.s32 %v848, 2
    %vm850 = vcmp.gt.s32.totalorder 0, %v849
    %v851 = vsel %vm850, 0, %v849
    %v852 = vsub.s32 32, %v851
    %v853 = vshll.u32 %v844, %v851
    %v854 = vshrl.u32 %v836, %v852
    %v855 = vor.u32 %v853, %v854
    %v856 = vsub.s32 4294967266, %v851
    %v857 = vadd.s32 %v856, 127
    %v858 = vshll.u32 %v857, 23
    %v859 = vor.u32 4788187, %v858
    %v860 = vand.u32 2147483647, %v859
    %v862 = vcvt.s32.f32 %v855
    %v863 = vmul.f32 %v862, %v860
    %v864 = vxor.u32 %v863, 2147483648
    %v865 = vsel %vm782, %v864, %v863
    %v866 = vsub.s32 4, %v842
    %v867 = vsel %vm782, %v866, %v842
    %v868 = vsel %vm781, %v572, %v865
    %v869 = vsel %vm781, 0, %v867
    %v870 = vcosq.f32.pop %v868
    %v871 = vsinq.f32.pop %v868
    %vm872 = vweird.f32 %v572
    %v873 = vand.u32 %v869, 3
    %vm874 = vcmp.lt.s32.totalorder %v873, 2
    %vm875 = vcmp.eq.s32.totalorder %v873, 0
    %v876 = vxor.u32 %v871, 2147483648
    %v877 = vsel %vm875, %v870, %v876
    %vm878 = vcmp.eq.s32.totalorder %v873, 2
    %v879 = vxor.u32 %v870, 2147483648
    %v880 = vsel %vm878, %v879, %v871
    %v881 = vsel %vm874, %v877, %v880
    %v882 = vsel %vm872, nan, %v881
    %v883 = vand.u32 2147483647, %v573
    %vm884 = vcmp.le.f32.partialorder %v883, 0.7853982
    %vm885 = vcmp.lt.s32.totalorder %v573, 0
    %v886 = vand.u32 %v573, 2139095040
    %v887 = vshrl.u32 %v886, 23
    %v888 = vsub.s32 %v887, 127
    %v889 = vand.u32 2147483647, %v573
    %v890 = vand.u32 %v889, 8388607
    %v891 = vor.u32 %v890, 8388608
    %v892 = vsub.s32 0, %v891
    %v893 = vadd.s32 %v888, 1
    %vm894 = vcmp.gt.s32.totalorder %v893, 0
    %v895 = vsel %vm894, %v893, 0
    %v896 = vshrl.u32 %v895, 5
    %v897 = vand.u32 %v895, 31
    %v898 = vsub.s32 32, %v897
    %v899 = vshrl.u32 683565275, %v898
    %v900 = vshll.u32 683565275, %v897
    %v901 = vshrl.u32 2475754826, %v898
    %v902 = vor.u32 %v900, %v901
    %v903 = vshll.u32 2475754826, %v897
    %v904 = vshrl.u32 2131351028, %v898
    %v905 = vor.u32 %v903, %v904
    %v906 = vshll.u32 2131351028, %v897
    %v907 = vshrl.u32 2102212464, %v898
    %v908 = vor.u32 %v906, %v907
    %v909 = vshll.u32 2102212464, %v897
    %v910 = vshrl.u32 920167782, %v898
    %v911 = vor.u32 %v909, %v910
    %v912 = vshll.u32 920167782, %v897
    %v913 = vshrl.u32 1326507024, %v898
    %v914 = vor.u32 %v912, %v913
    %vm915 = vcmp.lt.s32.totalorder %v896, 1
    %vm916 = vcmp.lt.s32.totalorder %v896, 2
    %vm917 = vcmp.lt.s32.totalorder %v896, 3
    %vm918 = vcmp.lt.s32.totalorder %v896, 4
    %v919 = vsel %vm915, %v899, %v902
    %v920 = vsel %vm918, %v908, 2102212464
    %v921 = vsel %vm917, %v905, %v920
    %v922 = vsel %vm916, %v919, %v921
    %v923 = vsel %vm915, %v902, %v905
    %v924 = vsel %vm918, %v911, 920167782
    %v925 = vsel %vm917, %v908, %v924
    %v926 = vsel %vm916, %v923, %v925
    %v927 = vsel %vm915, %v905, %v908
    %v928 = vsel %vm918, %v914, 1326507024
    %v929 = vsel %vm917, %v911, %v928
    %v930 = vsel %vm916, %v927, %v929
    %v931 = vshll.u32 %v891, 8
    %v932 = vmul.u32.u64.compose %v931, %v930
    %v933 = vextract.low.u32 %v932
    %v934 = vextract.high.u32 %v932
    %v935 = vmul.u32.u64.compose %v931, %v926
    %v936 = vextract.low.u32 %v935
    %v937 = vextract.high.u32 %v935
    %v938 = vmul.u32 %v931, %v922
    %v939 = vadd.s32 %v934, %v936
    %vm940 = vc.u32 %v934, %v936
    %v941 = vadd.s32 %v937, 1
    %v942 = vsel %vm940, %v941, %v937
    %v943 = vadd.s32 %v938, %v942
    %v944 = vadd.s32 %v943, 536870912
    %v945 = vshrl.u32 %v944, 30
    %v946 = vshll.u32 %v945, 30
    %v947 = vsub.s32 %v943, %v946
    %vm948 = vcmp.lt.s32.totalorder %v947, 0
    %v949 = vsub.s32 0, %v947
    %v950 = vsel %vm948, %v949, %v947
    %v951 = vclz %v950
    %v952 = vsub.s32 %v951, 2
    %vm953 = vcmp.gt.s32.totalorder 0, %v952
    %v954 = vsel %vm953, 0, %v952
    %v955 = vsub.s32 32, %v954
    %v956 = vshll.u32 %v947, %v954
    %v957 = vshrl.u32 %v939, %v955
    %v958 = vor.u32 %v956, %v957
    %v959 = vsub.s32 4294967266, %v954
    %v960 = vadd.s32 %v959, 127
    %v961 = vshll.u32 %v960, 23
    %v962 = vor.u32 4788187, %v961
    %v963 = vand.u32 2147483647, %v962
    %v965 = vcvt.s32.f32 %v958
    %v966 = vmul.f32 %v965, %v963
    %v967 = vxor.u32 %v966, 2147483648
    %v968 = vsel %vm885, %v967, %v966
    %v969 = vsub.s32 4, %v945
    %v970 = vsel %vm885, %v969, %v945
    %v971 = vsel %vm884, %v573, %v968
    %v972 = vsel %vm884, 0, %v970
    %v973 = vcosq.f32.pop %v971
    %v974 = vsinq.f32.pop %v971
    %vm975 = vweird.f32 %v573
    %v976 = vand.u32 %v972, 3
    %vm977 = vcmp.lt.s32.totalorder %v976, 2
    %vm978 = vcmp.eq.s32.totalorder %v976, 0
    %v979 = vxor.u32 %v974, 2147483648
    %v980 = vsel %vm978, %v973, %v979
    %vm981 = vcmp.eq.s32.totalorder %v976, 2
    %v982 = vxor.u32 %v973, 2147483648
    %v983 = vsel %vm981, %v982, %v974
    %v984 = vsel %vm977, %v980, %v983
    %v985 = vsel %vm975, nan, %v984
    %v986 = vld [vmem:[%s2] sm:$0xff]
    %v987 = vld [vmem:[%s2 + $0x8] sm:$0xff]
    %vm988 = vcmask 261120
    %v990 = vsel %vm988, %v986, 0
    %v993 = vsel %vm988, %v987, 0
    %995 = vmatprep.subr.mxu0 0.0
    %v996 = vand.u32 %v676, 4294901760
    %997 = vmatpush1.msra.mxu0 %v996
    %998 = vmatprep.subr.mxu0 0.0
    %v999 = vand.u32 %v779, 4294901760
    %1000 = vmatpush1.msra.mxu0 %v999
    %1001 = vmatprep.subr.mxu0 0.0
    %v1002 = vand.u32 %v882, 4294901760
    %1003 = vmatpush1.msra.mxu0 %v1002
    %1004 = vmatprep.subr.mxu0 0.0
    %v1005 = vand.u32 %v985, 4294901760
    %1006 = vmatpush1.msra.mxu0 %v1005
    %1007 = vmatprep.subr.mxu0 0.0
    %1008 = vmatpush1.msra.mxu0 0.0
    %1009 = vmatprep.subr.mxu0 0.0
    %1010 = vmatpush1.msra.mxu0 0.0
    %1011 = vmatprep.subr.mxu0 0.0
    %1012 = vmatpush1.msra.mxu0 0.0
    %1013 = vmatprep.subr.mxu0 0.0
    %1014 = vmatpush1.msra.mxu0 0.0
    %1015 = vmatprep.subr.mxu0 0.0
    %1016 = vmatpush1.msra.mxu0 0.0
    %1017 = vmatprep.subr.mxu0 0.0
    %1018 = vmatpush1.msra.mxu0 0.0
    %1019 = vmatprep.subr.mxu0 0.0
    %1020 = vmatpush1.msra.mxu0 0.0
    %1021 = vmatprep.subr.mxu0 0.0
    %1022 = vmatpush1.msra.mxu0 0.0
    %1023 = vmatprep.subr.mxu0 0.0
    %1024 = vmatpush1.msra.mxu0 0.0
    %1025 = vmatprep.subr.mxu0 0.0
    %1026 = vmatpush1.msra.mxu0 0.0
    %1027 = vmatprep.subr.mxu0 0.0
    %1028 = vmatpush1.msra.mxu0 0.0
    %1029 = vmatprep.subr.mxu0 0.0
    %1030 = vmatpush1.msra.mxu0 0.0
    %1031 = vmatprep.subr.mxu0 0.0
    %1032 = vmatpush1.msra.mxu0 0.0
    %1033 = vmatprep.subr.mxu0 0.0
    %1034 = vmatpush1.msra.mxu0 0.0
    %1035 = vmatprep.subr.mxu0 0.0
    %1036 = vmatpush1.msra.mxu0 0.0
    %1037 = vmatprep.subr.mxu0 0.0
    %1038 = vmatpush1.msra.mxu0 0.0
    %1039 = vmatprep.subr.mxu0 0.0
    %1040 = vmatpush1.msra.mxu0 0.0
    %1041 = vmatprep.subr.mxu0 0.0
    %1042 = vmatpush1.msra.mxu0 0.0
    %1043 = vmatprep.subr.mxu0 0.0
    %1044 = vmatpush1.msra.mxu0 0.0
    %1045 = vmatprep.subr.mxu0 0.0
    %1046 = vmatpush1.msra.mxu0 0.0
    %1047 = vmatprep.subr.mxu0 0.0
    %1048 = vmatpush1.msra.mxu0 0.0
    %1049 = vmatprep.subr.mxu0 0.0
    %1050 = vmatpush1.msra.mxu0 0.0
    %1051 = vmatprep.subr.mxu0 0.0
    %1052 = vmatpush1.msra.mxu0 0.0
    %1053 = vmatprep.subr.mxu0 0.0
    %1054 = vmatpush1.msra.mxu0 0.0
    %1055 = vmatprep.subr.mxu0 0.0
    %1056 = vmatpush1.msra.mxu0 0.0
    %1057 = vmatprep.subr.mxu0 0.0
    %1058 = vmatpush1.msra.mxu0 0.0
    %1059 = vmatprep.subr.mxu0 0.0
    %1060 = vmatpush1.msra.mxu0 0.0
    %1061 = vmatprep.subr.mxu0 0.0
    %1062 = vmatpush1.msra.mxu0 0.0
    %1063 = vmatprep.mubr.f32.mxu0 0.0
    %v1064 = vand.u32 %v990, 4294901760
    %v1065 = vsub.f32 %v990, %v1064
    %v1066 = vand.u32 %v1065, 4294901760
    %v1067 = vsub.f32 %v1065, %v1066
    %v1068 = vand.u32 %v1067, 4294901760
    %1069 = vmatmul.mubr.f32.gmra.mrb[0].mxu0 %v1068
    %v1070 = vpop.f32.mrb[0].mxu0
    %v1071 = vadd.f32 0.0, %v1070
    %v1072 = vpop.f32.mrb[0].mxu0
    %1073 = vmatprep.mubr.f32.mxu0 0.0
    %v1074 = vand.u32 %v993, 4294901760
    %v1075 = vsub.f32 %v993, %v1074
    %v1076 = vand.u32 %v1075, 4294901760
    %v1077 = vsub.f32 %v1075, %v1076
    %v1078 = vand.u32 %v1077, 4294901760
    %1079 = vmatmul.mubr.f32.gmra.mrb[0].mxu0 %v1078
    %v1080 = vpop.f32.mrb[0].mxu0
    %v1081 = vadd.f32 0.0, %v1080
    %v1082 = vpop.f32.mrb[0].mxu0
    %1083 = vdwg.mxu0
    %1084 = vmatprep.subr.mxu0 0.0
    %v1085 = vand.u32 %v676, 4294901760
    %v1086 = vsub.f32 %v676, %v1085
    %v1087 = vand.u32 %v1086, 4294901760
    %v1088 = vsub.f32 %v1086, %v1087
    %v1089 = vand.u32 %v1088, 4294901760
    %1090 = vmatpush1.msra.mxu0 %v1089
    %1091 = vmatprep.subr.mxu0 0.0
    %v1092 = vand.u32 %v779, 4294901760
    %v1093 = vsub.f32 %v779, %v1092
    %v1094 = vand.u32 %v1093, 4294901760
    %v1095 = vsub.f32 %v1093, %v1094
    %v1096 = vand.u32 %v1095, 4294901760
    %1097 = vmatpush1.msra.mxu0 %v1096
    %1098 = vmatprep.subr.mxu0 0.0
    %v1099 = vand.u32 %v882, 4294901760
    %v1100 = vsub.f32 %v882, %v1099
    %v1101 = vand.u32 %v1100, 4294901760
    %v1102 = vsub.f32 %v1100, %v1101
    %v1103 = vand.u32 %v1102, 4294901760
    %1104 = vmatpush1.msra.mxu0 %v1103
    %1105 = vmatprep.subr.mxu0 0.0
    %v1106 = vand.u32 %v985, 4294901760
    %v1107 = vsub.f32 %v985, %v1106
    %v1108 = vand.u32 %v1107, 4294901760
    %v1109 = vsub.f32 %v1107, %v1108
    %v1110 = vand.u32 %v1109, 4294901760
    %1111 = vmatpush1.msra.mxu0 %v1110
    %1112 = vmatprep.subr.mxu0 0.0
    %1113 = vmatpush1.msra.mxu0 0.0
    %1114 = vmatprep.subr.mxu0 0.0
    %1115 = vmatpush1.msra.mxu0 0.0
    %1116 = vmatprep.subr.mxu0 0.0
    %1117 = vmatpush1.msra.mxu0 0.0
    %1118 = vmatprep.subr.mxu0 0.0
    %1119 = vmatpush1.msra.mxu0 0.0
    %1120 = vmatprep.subr.mxu0 0.0
    %1121 = vmatpush1.msra.mxu0 0.0
    %1122 = vmatprep.subr.mxu0 0.0
    %1123 = vmatpush1.msra.mxu0 0.0
    %1124 = vmatprep.subr.mxu0 0.0
    %1125 = vmatpush1.msra.mxu0 0.0
    %1126 = vmatprep.subr.mxu0 0.0
    %1127 = vmatpush1.msra.mxu0 0.0
    %1128 = vmatprep.subr.mxu0 0.0
    %1129 = vmatpush1.msra.mxu0 0.0
    %1130 = vmatprep.subr.mxu0 0.0
    %1131 = vmatpush1.msra.mxu0 0.0
    %1132 = vmatprep.subr.mxu0 0.0
    %1133 = vmatpush1.msra.mxu0 0.0
    %1134 = vmatprep.subr.mxu0 0.0
    %1135 = vmatpush1.msra.mxu0 0.0
    %1136 = vmatprep.subr.mxu0 0.0
    %1137 = vmatpush1.msra.mxu0 0.0
    %1138 = vmatprep.subr.mxu0 0.0
    %1139 = vmatpush1.msra.mxu0 0.0
    %1140 = vmatprep.subr.mxu0 0.0
    %1141 = vmatpush1.msra.mxu0 0.0
    %1142 = vmatprep.subr.mxu0 0.0
    %1143 = vmatpush1.msra.mxu0 0.0
    %1144 = vmatprep.subr.mxu0 0.0
    %1145 = vmatpush1.msra.mxu0 0.0
    %1146 = vmatprep.subr.mxu0 0.0
    %1147 = vmatpush1.msra.mxu0 0.0
    %1148 = vmatprep.subr.mxu0 0.0
    %1149 = vmatpush1.msra.mxu0 0.0
    %1150 = vmatprep.subr.mxu0 0.0
    %1151 = vmatpush1.msra.mxu0 0.0
    %1152 = vmatprep.subr.mxu0 0.0
    %1153 = vmatpush1.msra.mxu0 0.0
    %1154 = vmatprep.subr.mxu0 0.0
    %1155 = vmatpush1.msra.mxu0 0.0
    %1156 = vmatprep.subr.mxu0 0.0
    %1157 = vmatpush1.msra.mxu0 0.0
    %1158 = vmatprep.subr.mxu0 0.0
    %1159 = vmatpush1.msra.mxu0 0.0
    %1160 = vmatprep.subr.mxu0 0.0
    %1161 = vmatpush1.msra.mxu0 0.0
    %1162 = vmatprep.subr.mxu0 0.0
    %1163 = vmatpush1.msra.mxu0 0.0
    %1164 = vmatprep.subr.mxu0 0.0
    %1165 = vmatpush1.msra.mxu0 0.0
    %1166 = vmatprep.subr.mxu0 0.0
    %1167 = vmatpush1.msra.mxu0 0.0
    %1168 = vmatprep.mubr.f32.mxu0 0.0
    %v1169 = vand.u32 %v990, 4294901760
    %1170 = vmatmul.mubr.f32.gmra.mrb[0].mxu0 %v1169
    %v1171 = vpop.f32.mrb[0].mxu0
    %v1172 = vadd.f32 %v1071, %v1171
    %v1173 = vpop.f32.mrb[0].mxu0
    %1174 = vmatprep.mubr.f32.mxu0 0.0
    %v1175 = vand.u32 %v993, 4294901760
    %1176 = vmatmul.mubr.f32.gmra.mrb[0].mxu0 %v1175
    %v1177 = vpop.f32.mrb[0].mxu0
    %v1178 = vadd.f32 %v1081, %v1177
    %v1179 = vpop.f32.mrb[0].mxu0
    %1180 = vdwg.mxu0
    %1181 = vmatprep.subr.mxu0 0.0
    %v1182 = vand.u32 %v676, 4294901760
    %v1183 = vsub.f32 %v676, %v1182
    %1184 = vmatpush1.msra.mxu0 %v1183
    %1185 = vmatprep.subr.mxu0 0.0
    %v1186 = vand.u32 %v779, 4294901760
    %v1187 = vsub.f32 %v779, %v1186
    %1188 = vmatpush1.msra.mxu0 %v1187
    %1189 = vmatprep.subr.mxu0 0.0
    %v1190 = vand.u32 %v882, 4294901760
    %v1191 = vsub.f32 %v882, %v1190
    %1192 = vmatpush1.msra.mxu0 %v1191
    %1193 = vmatprep.subr.mxu0 0.0
    %v1194 = vand.u32 %v985, 4294901760
    %v1195 = vsub.f32 %v985, %v1194
    %1196 = vmatpush1.msra.mxu0 %v1195
    %1197 = vmatprep.subr.mxu0 0.0
    %1198 = vmatpush1.msra.mxu0 0.0
    %1199 = vmatprep.subr.mxu0 0.0
    %1200 = vmatpush1.msra.mxu0 0.0
    %1201 = vmatprep.subr.mxu0 0.0
    %1202 = vmatpush1.msra.mxu0 0.0
    %1203 = vmatprep.subr.mxu0 0.0
    %1204 = vmatpush1.msra.mxu0 0.0
    %1205 = vmatprep.subr.mxu0 0.0
    %1206 = vmatpush1.msra.mxu0 0.0
    %1207 = vmatprep.subr.mxu0 0.0
    %1208 = vmatpush1.msra.mxu0 0.0
    %1209 = vmatprep.subr.mxu0 0.0
    %1210 = vmatpush1.msra.mxu0 0.0
    %1211 = vmatprep.subr.mxu0 0.0
    %1212 = vmatpush1.msra.mxu0 0.0
    %1213 = vmatprep.subr.mxu0 0.0
    %1214 = vmatpush1.msra.mxu0 0.0
    %1215 = vmatprep.subr.mxu0 0.0
    %1216 = vmatpush1.msra.mxu0 0.0
    %1217 = vmatprep.subr.mxu0 0.0
    %1218 = vmatpush1.msra.mxu0 0.0
    %1219 = vmatprep.subr.mxu0 0.0
    %1220 = vmatpush1.msra.mxu0 0.0
    %1221 = vmatprep.subr.mxu0 0.0
    %1222 = vmatpush1.msra.mxu0 0.0
    %1223 = vmatprep.subr.mxu0 0.0
    %1224 = vmatpush1.msra.mxu0 0.0
    %1225 = vmatprep.subr.mxu0 0.0
    %1226 = vmatpush1.msra.mxu0 0.0
    %1227 = vmatprep.subr.mxu0 0.0
    %1228 = vmatpush1.msra.mxu0 0.0
    %1229 = vmatprep.subr.mxu0 0.0
    %1230 = vmatpush1.msra.mxu0 0.0
    %1231 = vmatprep.subr.mxu0 0.0
    %1232 = vmatpush1.msra.mxu0 0.0
    %1233 = vmatprep.subr.mxu0 0.0
    %1234 = vmatpush1.msra.mxu0 0.0
    %1235 = vmatprep.subr.mxu0 0.0
    %1236 = vmatpush1.msra.mxu0 0.0
    %1237 = vmatprep.subr.mxu0 0.0
    %1238 = vmatpush1.msra.mxu0 0.0
    %1239 = vmatprep.subr.mxu0 0.0
    %1240 = vmatpush1.msra.mxu0 0.0
    %1241 = vmatprep.subr.mxu0 0.0
    %1242 = vmatpush1.msra.mxu0 0.0
    %1243 = vmatprep.subr.mxu0 0.0
    %1244 = vmatpush1.msra.mxu0 0.0
    %1245 = vmatprep.subr.mxu0 0.0
    %1246 = vmatpush1.msra.mxu0 0.0
    %1247 = vmatprep.subr.mxu0 0.0
    %1248 = vmatpush1.msra.mxu0 0.0
    %1249 = vmatprep.subr.mxu0 0.0
    %1250 = vmatpush1.msra.mxu0 0.0
    %1251 = vmatprep.subr.mxu0 0.0
    %1252 = vmatpush1.msra.mxu0 0.0
    %1253 = vmatprep.mubr.f32.mxu0 0.0
    %v1254 = vand.u32 %v990, 4294901760
    %v1255 = vsub.f32 %v990, %v1254
    %1256 = vmatmul.mubr.f32.gmra.mrb[0].mxu0 %v1255
    %v1257 = vpop.f32.mrb[0].mxu0
    %v1258 = vadd.f32 %v1172, %v1257
    %v1259 = vpop.f32.mrb[0].mxu0
    %1260 = vmatprep.mubr.f32.mxu0 0.0
    %v1261 = vand.u32 %v993, 4294901760
    %v1262 = vsub.f32 %v993, %v1261
    %1263 = vmatmul.mubr.f32.gmra.mrb[0].mxu0 %v1262
    %v1264 = vpop.f32.mrb[0].mxu0
    %v1265 = vadd.f32 %v1178, %v1264
    %v1266 = vpop.f32.mrb[0].mxu0
    %1267 = vdwg.mxu0
    %1268 = vmatprep.subr.mxu0 0.0
    %v1269 = vand.u32 %v676, 4294901760
    %1270 = vmatpush1.msra.mxu0 %v1269
    %1271 = vmatprep.subr.mxu0 0.0
    %v1272 = vand.u32 %v779, 4294901760
    %1273 = vmatpush1.msra.mxu0 %v1272
    %1274 = vmatprep.subr.mxu0 0.0
    %v1275 = vand.u32 %v882, 4294901760
    %1276 = vmatpush1.msra.mxu0 %v1275
    %1277 = vmatprep.subr.mxu0 0.0
    %v1278 = vand.u32 %v985, 4294901760
    %1279 = vmatpush1.msra.mxu0 %v1278
    %1280 = vmatprep.subr.mxu0 0.0
    %1281 = vmatpush1.msra.mxu0 0.0
    %1282 = vmatprep.subr.mxu0 0.0
    %1283 = vmatpush1.msra.mxu0 0.0
    %1284 = vmatprep.subr.mxu0 0.0
    %1285 = vmatpush1.msra.mxu0 0.0
    %1286 = vmatprep.subr.mxu0 0.0
    %1287 = vmatpush1.msra.mxu0 0.0
    %1288 = vmatprep.subr.mxu0 0.0
    %1289 = vmatpush1.msra.mxu0 0.0
    %1290 = vmatprep.subr.mxu0 0.0
    %1291 = vmatpush1.msra.mxu0 0.0
    %1292 = vmatprep.subr.mxu0 0.0
    %1293 = vmatpush1.msra.mxu0 0.0
    %1294 = vmatprep.subr.mxu0 0.0
    %1295 = vmatpush1.msra.mxu0 0.0
    %1296 = vmatprep.subr.mxu0 0.0
    %1297 = vmatpush1.msra.mxu0 0.0
    %1298 = vmatprep.subr.mxu0 0.0
    %1299 = vmatpush1.msra.mxu0 0.0
    %1300 = vmatprep.subr.mxu0 0.0
    %1301 = vmatpush1.msra.mxu0 0.0
    %1302 = vmatprep.subr.mxu0 0.0
    %1303 = vmatpush1.msra.mxu0 0.0
    %1304 = vmatprep.subr.mxu0 0.0
    %1305 = vmatpush1.msra.mxu0 0.0
    %1306 = vmatprep.subr.mxu0 0.0
    %1307 = vmatpush1.msra.mxu0 0.0
    %1308 = vmatprep.subr.mxu0 0.0
    %1309 = vmatpush1.msra.mxu0 0.0
    %1310 = vmatprep.subr.mxu0 0.0
    %1311 = vmatpush1.msra.mxu0 0.0
    %1312 = vmatprep.subr.mxu0 0.0
    %1313 = vmatpush1.msra.mxu0 0.0
    %1314 = vmatprep.subr.mxu0 0.0
    %1315 = vmatpush1.msra.mxu0 0.0
    %1316 = vmatprep.subr.mxu0 0.0
    %1317 = vmatpush1.msra.mxu0 0.0
    %1318 = vmatprep.subr.mxu0 0.0
    %1319 = vmatpush1.msra.mxu0 0.0
    %1320 = vmatprep.subr.mxu0 0.0
    %1321 = vmatpush1.msra.mxu0 0.0
    %1322 = vmatprep.subr.mxu0 0.0
    %1323 = vmatpush1.msra.mxu0 0.0
    %1324 = vmatprep.subr.mxu0 0.0
    %1325 = vmatpush1.msra.mxu0 0.0
    %1326 = vmatprep.subr.mxu0 0.0
    %1327 = vmatpush1.msra.mxu0 0.0
    %1328 = vmatprep.subr.mxu0 0.0
    %1329 = vmatpush1.msra.mxu0 0.0
    %1330 = vmatprep.subr.mxu0 0.0
    %1331 = vmatpush1.msra.mxu0 0.0
    %1332 = vmatprep.subr.mxu0 0.0
    %1333 = vmatpush1.msra.mxu0 0.0
    %1334 = vmatprep.subr.mxu0 0.0
    %1335 = vmatpush1.msra.mxu0 0.0
    %1336 = vmatprep.mubr.f32.mxu0 0.0
    %v1337 = vand.u32 %v990, 4294901760
    %v1338 = vsub.f32 %v990, %v1337
    %v1339 = vand.u32 %v1338, 4294901760
    %1340 = vmatmul.mubr.f32.gmra.mrb[0].mxu0 %v1339
    %v1341 = vpop.f32.mrb[0].mxu0
    %v1342 = vadd.f32 %v1258, %v1341
    %v1343 = vpop.f32.mrb[0].mxu0
    %1344 = vmatprep.mubr.f32.mxu0 0.0
    %v1345 = vand.u32 %v993, 4294901760
    %v1346 = vsub.f32 %v993, %v1345
    %v1347 = vand.u32 %v1346, 4294901760
    %1348 = vmatmul.mubr.f32.gmra.mrb[0].mxu0 %v1347
    %v1349 = vpop.f32.mrb[0].mxu0
    %v1350 = vadd.f32 %v1265, %v1349
    %v1351 = vpop.f32.mrb[0].mxu0
    %1352 = vdwg.mxu0
    %1353 = vmatprep.subr.mxu0 0.0
    %v1354 = vand.u32 %v676, 4294901760
    %v1355 = vsub.f32 %v676, %v1354
    %v1356 = vand.u32 %v1355, 4294901760
    %1357 = vmatpush1.msra.mxu0 %v1356
    %1358 = vmatprep.subr.mxu0 0.0
    %v1359 = vand.u32 %v779, 4294901760
    %v1360 = vsub.f32 %v779, %v1359
    %v1361 = vand.u32 %v1360, 4294901760
    %1362 = vmatpush1.msra.mxu0 %v1361
    %1363 = vmatprep.subr.mxu0 0.0
    %v1364 = vand.u32 %v882, 4294901760
    %v1365 = vsub.f32 %v882, %v1364
    %v1366 = vand.u32 %v1365, 4294901760
    %1367 = vmatpush1.msra.mxu0 %v1366
    %1368 = vmatprep.subr.mxu0 0.0
    %v1369 = vand.u32 %v985, 4294901760
    %v1370 = vsub.f32 %v985, %v1369
    %v1371 = vand.u32 %v1370, 4294901760
    %1372 = vmatpush1.msra.mxu0 %v1371
    %1373 = vmatprep.subr.mxu0 0.0
    %1374 = vmatpush1.msra.mxu0 0.0
    %1375 = vmatprep.subr.mxu0 0.0
    %1376 = vmatpush1.msra.mxu0 0.0
    %1377 = vmatprep.subr.mxu0 0.0
    %1378 = vmatpush1.msra.mxu0 0.0
    %1379 = vmatprep.subr.mxu0 0.0
    %1380 = vmatpush1.msra.mxu0 0.0
    %1381 = vmatprep.subr.mxu0 0.0
    %1382 = vmatpush1.msra.mxu0 0.0
    %1383 = vmatprep.subr.mxu0 0.0
    %1384 = vmatpush1.msra.mxu0 0.0
    %1385 = vmatprep.subr.mxu0 0.0
    %1386 = vmatpush1.msra.mxu0 0.0
    %1387 = vmatprep.subr.mxu0 0.0
    %1388 = vmatpush1.msra.mxu0 0.0
    %1389 = vmatprep.subr.mxu0 0.0
    %1390 = vmatpush1.msra.mxu0 0.0
    %1391 = vmatprep.subr.mxu0 0.0
    %1392 = vmatpush1.msra.mxu0 0.0
    %1393 = vmatprep.subr.mxu0 0.0
    %1394 = vmatpush1.msra.mxu0 0.0
    %1395 = vmatprep.subr.mxu0 0.0
    %1396 = vmatpush1.msra.mxu0 0.0
    %1397 = vmatprep.subr.mxu0 0.0
    %1398 = vmatpush1.msra.mxu0 0.0
    %1399 = vmatprep.subr.mxu0 0.0
    %1400 = vmatpush1.msra.mxu0 0.0
    %1401 = vmatprep.subr.mxu0 0.0
    %1402 = vmatpush1.msra.mxu0 0.0
    %1403 = vmatprep.subr.mxu0 0.0
    %1404 = vmatpush1.msra.mxu0 0.0
    %1405 = vmatprep.subr.mxu0 0.0
    %1406 = vmatpush1.msra.mxu0 0.0
    %1407 = vmatprep.subr.mxu0 0.0
    %1408 = vmatpush1.msra.mxu0 0.0
    %1409 = vmatprep.subr.mxu0 0.0
    %1410 = vmatpush1.msra.mxu0 0.0
    %1411 = vmatprep.subr.mxu0 0.0
    %1412 = vmatpush1.msra.mxu0 0.0
    %1413 = vmatprep.subr.mxu0 0.0
    %1414 = vmatpush1.msra.mxu0 0.0
    %1415 = vmatprep.subr.mxu0 0.0
    %1416 = vmatpush1.msra.mxu0 0.0
    %1417 = vmatprep.subr.mxu0 0.0
    %1418 = vmatpush1.msra.mxu0 0.0
    %1419 = vmatprep.subr.mxu0 0.0
    %1420 = vmatpush1.msra.mxu0 0.0
    %1421 = vmatprep.subr.mxu0 0.0
    %1422 = vmatpush1.msra.mxu0 0.0
    %1423 = vmatprep.subr.mxu0 0.0
    %1424 = vmatpush1.msra.mxu0 0.0
    %1425 = vmatprep.subr.mxu0 0.0
    %1426 = vmatpush1.msra.mxu0 0.0
    %1427 = vmatprep.subr.mxu0 0.0
    %1428 = vmatpush1.msra.mxu0 0.0
    %1429 = vmatprep.mubr.f32.mxu0 0.0
    %v1430 = vand.u32 %v990, 4294901760
    %1431 = vmatmul.mubr.f32.gmra.mrb[0].mxu0 %v1430
    %v1432 = vpop.f32.mrb[0].mxu0
    %v1433 = vadd.f32 %v1342, %v1432
    %v1434 = vpop.f32.mrb[0].mxu0
    %1435 = vmatprep.mubr.f32.mxu0 0.0
    %v1436 = vand.u32 %v993, 4294901760
    %1437 = vmatmul.mubr.f32.gmra.mrb[0].mxu0 %v1436
    %v1438 = vpop.f32.mrb[0].mxu0
    %v1439 = vadd.f32 %v1350, %v1438
    %v1440 = vpop.f32.mrb[0].mxu0
    %1441 = vdwg.mxu0
    %1442 = vmatprep.subr.mxu0 0.0
    %v1443 = vand.u32 %v676, 4294901760
    %1444 = vmatpush1.msra.mxu0 %v1443
    %1445 = vmatprep.subr.mxu0 0.0
    %v1446 = vand.u32 %v779, 4294901760
    %1447 = vmatpush1.msra.mxu0 %v1446
    %1448 = vmatprep.subr.mxu0 0.0
    %v1449 = vand.u32 %v882, 4294901760
    %1450 = vmatpush1.msra.mxu0 %v1449
    %1451 = vmatprep.subr.mxu0 0.0
    %v1452 = vand.u32 %v985, 4294901760
    %1453 = vmatpush1.msra.mxu0 %v1452
    %1454 = vmatprep.subr.mxu0 0.0
    %1455 = vmatpush1.msra.mxu0 0.0
    %1456 = vmatprep.subr.mxu0 0.0
    %1457 = vmatpush1.msra.mxu0 0.0
    %1458 = vmatprep.subr.mxu0 0.0
    %1459 = vmatpush1.msra.mxu0 0.0
    %1460 = vmatprep.subr.mxu0 0.0
    %1461 = vmatpush1.msra.mxu0 0.0
    %1462 = vmatprep.subr.mxu0 0.0
    %1463 = vmatpush1.msra.mxu0 0.0
    %1464 = vmatprep.subr.mxu0 0.0
    %1465 = vmatpush1.msra.mxu0 0.0
    %1466 = vmatprep.subr.mxu0 0.0
    %1467 = vmatpush1.msra.mxu0 0.0
    %1468 = vmatprep.subr.mxu0 0.0
    %1469 = vmatpush1.msra.mxu0 0.0
    %1470 = vmatprep.subr.mxu0 0.0
    %1471 = vmatpush1.msra.mxu0 0.0
    %1472 = vmatprep.subr.mxu0 0.0
    %1473 = vmatpush1.msra.mxu0 0.0
    %1474 = vmatprep.subr.mxu0 0.0
    %1475 = vmatpush1.msra.mxu0 0.0
    %1476 = vmatprep.subr.mxu0 0.0
    %1477 = vmatpush1.msra.mxu0 0.0
    %1478 = vmatprep.subr.mxu0 0.0
    %1479 = vmatpush1.msra.mxu0 0.0
    %1480 = vmatprep.subr.mxu0 0.0
    %1481 = vmatpush1.msra.mxu0 0.0
    %1482 = vmatprep.subr.mxu0 0.0
    %1483 = vmatpush1.msra.mxu0 0.0
    %1484 = vmatprep.subr.mxu0 0.0
    %1485 = vmatpush1.msra.mxu0 0.0
    %1486 = vmatprep.subr.mxu0 0.0
    %1487 = vmatpush1.msra.mxu0 0.0
    %1488 = vmatprep.subr.mxu0 0.0
    %1489 = vmatpush1.msra.mxu0 0.0
    %1490 = vmatprep.subr.mxu0 0.0
    %1491 = vmatpush1.msra.mxu0 0.0
    %1492 = vmatprep.subr.mxu0 0.0
    %1493 = vmatpush1.msra.mxu0 0.0
    %1494 = vmatprep.subr.mxu0 0.0
    %1495 = vmatpush1.msra.mxu0 0.0
    %1496 = vmatprep.subr.mxu0 0.0
    %1497 = vmatpush1.msra.mxu0 0.0
    %1498 = vmatprep.subr.mxu0 0.0
    %1499 = vmatpush1.msra.mxu0 0.0
    %1500 = vmatprep.subr.mxu0 0.0
    %1501 = vmatpush1.msra.mxu0 0.0
    %1502 = vmatprep.subr.mxu0 0.0
    %1503 = vmatpush1.msra.mxu0 0.0
    %1504 = vmatprep.subr.mxu0 0.0
    %1505 = vmatpush1.msra.mxu0 0.0
    %1506 = vmatprep.subr.mxu0 0.0
    %1507 = vmatpush1.msra.mxu0 0.0
    %1508 = vmatprep.subr.mxu0 0.0
    %1509 = vmatpush1.msra.mxu0 0.0
    %1510 = vmatprep.mubr.f32.mxu0 0.0
    %v1511 = vand.u32 %v990, 4294901760
    %1512 = vmatmul.mubr.f32.gmra.mrb[0].mxu0 %v1511
    %v1513 = vpop.f32.mrb[0].mxu0
    %v1514 = vadd.f32 %v1433, %v1513
    %v1515 = vpop.f32.mrb[0].mxu0
    %1516 = vmatprep.mubr.f32.mxu0 0.0
    %v1517 = vand.u32 %v993, 4294901760
    %1518 = vmatmul.mubr.f32.gmra.mrb[0].mxu0 %v1517
    %v1519 = vpop.f32.mrb[0].mxu0
    %v1520 = vadd.f32 %v1439, %v1519
    %v1521 = vpop.f32.mrb[0].mxu0
    %1522 = vdwg.mxu0
    %v1523 = vmul.f32 %v517, %v524
    %v1525 = vsel %vm40, %v1523, 0
    %1527 = vmatprep.subr.mxu0 0.0
    %v1528 = vand.u32 %v1514, 4294901760
    %1529 = vmatpush1.msra.mxu0 %v1528
    %1530 = vmatprep.subr.mxu0 0.0
    %v1531 = vand.u32 %v1520, 4294901760
    %1532 = vmatpush1.msra.mxu0 %v1531
    %1533 = vmatprep.subr.mxu0 0.0
    %1534 = vmatpush1.msra.mxu0 0.0
    %1535 = vmatprep.subr.mxu0 0.0
    %1536 = vmatpush1.msra.mxu0 0.0
    %1537 = vmatprep.subr.mxu0 0.0
    %1538 = vmatpush1.msra.mxu0 0.0
    %1539 = vmatprep.subr.mxu0 0.0
    %1540 = vmatpush1.msra.mxu0 0.0
    %1541 = vmatprep.subr.mxu0 0.0
    %1542 = vmatpush1.msra.mxu0 0.0
    %1543 = vmatprep.subr.mxu0 0.0
    %1544 = vmatpush1.msra.mxu0 0.0
    %1545 = vmatprep.subr.mxu0 0.0
    %1546 = vmatpush1.msra.mxu0 0.0
    %1547 = vmatprep.subr.mxu0 0.0
    %1548 = vmatpush1.msra.mxu0 0.0
    %1549 = vmatprep.subr.mxu0 0.0
    %1550 = vmatpush1.msra.mxu0 0.0
    %1551 = vmatprep.subr.mxu0 0.0
    %1552 = vmatpush1.msra.mxu0 0.0
    %1553 = vmatprep.subr.mxu0 0.0
    %1554 = vmatpush1.msra.mxu0 0.0
    %1555 = vmatprep.subr.mxu0 0.0
    %1556 = vmatpush1.msra.mxu0 0.0
    %1557 = vmatprep.subr.mxu0 0.0
    %1558 = vmatpush1.msra.mxu0 0.0
    %1559 = vmatprep.subr.mxu0 0.0
    %1560 = vmatpush1.msra.mxu0 0.0
    %1561 = vmatprep.subr.mxu0 0.0
    %1562 = vmatpush1.msra.mxu0 0.0
    %1563 = vmatprep.subr.mxu0 0.0
    %1564 = vmatpush1.msra.mxu0 0.0
    %1565 = vmatprep.subr.mxu0 0.0
    %1566 = vmatpush1.msra.mxu0 0.0
    %1567 = vmatprep.subr.mxu0 0.0
    %1568 = vmatpush1.msra.mxu0 0.0
    %1569 = vmatprep.subr.mxu0 0.0
    %1570 = vmatpush1.msra.mxu0 0.0
    %1571 = vmatprep.subr.mxu0 0.0
    %1572 = vmatpush1.msra.mxu0 0.0
    %1573 = vmatprep.subr.mxu0 0.0
    %1574 = vmatpush1.msra.mxu0 0.0
    %1575 = vmatprep.subr.mxu0 0.0
    %1576 = vmatpush1.msra.mxu0 0.0
    %1577 = vmatprep.subr.mxu0 0.0
    %1578 = vmatpush1.msra.mxu0 0.0
    %1579 = vmatprep.subr.mxu0 0.0
    %1580 = vmatpush1.msra.mxu0 0.0
    %1581 = vmatprep.subr.mxu0 0.0
    %1582 = vmatpush1.msra.mxu0 0.0
    %1583 = vmatprep.subr.mxu0 0.0
    %1584 = vmatpush1.msra.mxu0 0.0
    %1585 = vmatprep.subr.mxu0 0.0
    %1586 = vmatpush1.msra.mxu0 0.0
    %1587 = vmatprep.subr.mxu0 0.0
    %1588 = vmatpush1.msra.mxu0 0.0
    %1589 = vmatprep.subr.mxu0 0.0
    %1590 = vmatpush1.msra.mxu0 0.0
    %1591 = vmatprep.subr.mxu0 0.0
    %1592 = vmatpush1.msra.mxu0 0.0
    %1593 = vmatprep.mubr.f32.mxu0 0.0
    %v1594 = vand.u32 %v1525, 4294901760
    %v1595 = vsub.f32 %v1525, %v1594
    %v1596 = vand.u32 %v1595, 4294901760
    %v1597 = vsub.f32 %v1595, %v1596
    %v1598 = vand.u32 %v1597, 4294901760
    %1599 = vmatmul.mubr.f32.gmra.mrb[0].mxu0 %v1598
    %v1600 = vpop.f32.mrb[0].mxu0
    %v1601 = vadd.f32 0.0, %v1600
    %v1602 = vpop.f32.mrb[0].mxu0
    %1603 = vdwg.mxu0
    %1604 = vmatprep.subr.mxu0 0.0
    %v1605 = vand.u32 %v1514, 4294901760
    %v1606 = vsub.f32 %v1514, %v1605
    %v1607 = vand.u32 %v1606, 4294901760
    %v1608 = vsub.f32 %v1606, %v1607
    %v1609 = vand.u32 %v1608, 4294901760
    %1610 = vmatpush1.msra.mxu0 %v1609
    %1611 = vmatprep.subr.mxu0 0.0
    %v1612 = vand.u32 %v1520, 4294901760
    %v1613 = vsub.f32 %v1520, %v1612
    %v1614 = vand.u32 %v1613, 4294901760
    %v1615 = vsub.f32 %v1613, %v1614
    %v1616 = vand.u32 %v1615, 4294901760
    %1617 = vmatpush1.msra.mxu0 %v1616
    %1618 = vmatprep.subr.mxu0 0.0
    %1619 = vmatpush1.msra.mxu0 0.0
    %1620 = vmatprep.subr.mxu0 0.0
    %1621 = vmatpush1.msra.mxu0 0.0
    %1622 = vmatprep.subr.mxu0 0.0
    %1623 = vmatpush1.msra.mxu0 0.0
    %1624 = vmatprep.subr.mxu0 0.0
    %1625 = vmatpush1.msra.mxu0 0.0
    %1626 = vmatprep.subr.mxu0 0.0
    %1627 = vmatpush1.msra.mxu0 0.0
    %1628 = vmatprep.subr.mxu0 0.0
    %1629 = vmatpush1.msra.mxu0 0.0
    %1630 = vmatprep.subr.mxu0 0.0
    %1631 = vmatpush1.msra.mxu0 0.0
    %1632 = vmatprep.subr.mxu0 0.0
    %1633 = vmatpush1.msra.mxu0 0.0
    %1634 = vmatprep.subr.mxu0 0.0
    %1635 = vmatpush1.msra.mxu0 0.0
    %1636 = vmatprep.subr.mxu0 0.0
    %1637 = vmatpush1.msra.mxu0 0.0
    %1638 = vmatprep.subr.mxu0 0.0
    %1639 = vmatpush1.msra.mxu0 0.0
    %1640 = vmatprep.subr.mxu0 0.0
    %1641 = vmatpush1.msra.mxu0 0.0
    %1642 = vmatprep.subr.mxu0 0.0
    %1643 = vmatpush1.msra.mxu0 0.0
    %1644 = vmatprep.subr.mxu0 0.0
    %1645 = vmatpush1.msra.mxu0 0.0
    %1646 = vmatprep.subr.mxu0 0.0
    %1647 = vmatpush1.msra.mxu0 0.0
    %1648 = vmatprep.subr.mxu0 0.0
    %1649 = vmatpush1.msra.mxu0 0.0
    %1650 = vmatprep.subr.mxu0 0.0
    %1651 = vmatpush1.msra.mxu0 0.0
    %1652 = vmatprep.subr.mxu0 0.0
    %1653 = vmatpush1.msra.mxu0 0.0
    %1654 = vmatprep.subr.mxu0 0.0
    %1655 = vmatpush1.msra.mxu0 0.0
    %1656 = vmatprep.subr.mxu0 0.0
    %1657 = vmatpush1.msra.mxu0 0.0
    %1658 = vmatprep.subr.mxu0 0.0
    %1659 = vmatpush1.msra.mxu0 0.0
    %1660 = vmatprep.subr.mxu0 0.0
    %1661 = vmatpush1.msra.mxu0 0.0
    %1662 = vmatprep.subr.mxu0 0.0
    %1663 = vmatpush1.msra.mxu0 0.0
    %1664 = vmatprep.subr.mxu0 0.0
    %1665 = vmatpush1.msra.mxu0 0.0
    %1666 = vmatprep.subr.mxu0 0.0
    %1667 = vmatpush1.msra.mxu0 0.0
    %1668 = vmatprep.subr.mxu0 0.0
    %1669 = vmatpush1.msra.mxu0 0.0
    %1670 = vmatprep.subr.mxu0 0.0
    %1671 = vmatpush1.msra.mxu0 0.0
    %1672 = vmatprep.subr.mxu0 0.0
    %1673 = vmatpush1.msra.mxu0 0.0
    %1674 = vmatprep.subr.mxu0 0.0
    %1675 = vmatpush1.msra.mxu0 0.0
    %1676 = vmatprep.subr.mxu0 0.0
    %1677 = vmatpush1.msra.mxu0 0.0
    %1678 = vmatprep.mubr.f32.mxu0 0.0
    %v1679 = vand.u32 %v1525, 4294901760
    %1680 = vmatmul.mubr.f32.gmra.mrb[0].mxu0 %v1679
    %v1681 = vpop.f32.mrb[0].mxu0
    %v1682 = vadd.f32 %v1601, %v1681
    %v1683 = vpop.f32.mrb[0].mxu0
    %1684 = vdwg.mxu0
    %1685 = vmatprep.subr.mxu0 0.0
    %v1686 = vand.u32 %v1514, 4294901760
    %v1687 = vsub.f32 %v1514, %v1686
    %1688 = vmatpush1.msra.mxu0 %v1687
    %1689 = vmatprep.subr.mxu0 0.0
    %v1690 = vand.u32 %v1520, 4294901760
    %v1691 = vsub.f32 %v1520, %v1690
    %1692 = vmatpush1.msra.mxu0 %v1691
    %1693 = vmatprep.subr.mxu0 0.0
    %1694 = vmatpush1.msra.mxu0 0.0
    %1695 = vmatprep.subr.mxu0 0.0
    %1696 = vmatpush1.msra.mxu0 0.0
    %1697 = vmatprep.subr.mxu0 0.0
    %1698 = vmatpush1.msra.mxu0 0.0
    %1699 = vmatprep.subr.mxu0 0.0
    %1700 = vmatpush1.msra.mxu0 0.0
    %1701 = vmatprep.subr.mxu0 0.0
    %1702 = vmatpush1.msra.mxu0 0.0
    %1703 = vmatprep.subr.mxu0 0.0
    %1704 = vmatpush1.msra.mxu0 0.0
    %1705 = vmatprep.subr.mxu0 0.0
    %1706 = vmatpush1.msra.mxu0 0.0
    %1707 = vmatprep.subr.mxu0 0.0
    %1708 = vmatpush1.msra.mxu0 0.0
    %1709 = vmatprep.subr.mxu0 0.0
    %1710 = vmatpush1.msra.mxu0 0.0
    %1711 = vmatprep.subr.mxu0 0.0
    %1712 = vmatpush1.msra.mxu0 0.0
    %1713 = vmatprep.subr.mxu0 0.0
    %1714 = vmatpush1.msra.mxu0 0.0
    %1715 = vmatprep.subr.mxu0 0.0
    %1716 = vmatpush1.msra.mxu0 0.0
    %1717 = vmatprep.subr.mxu0 0.0
    %1718 = vmatpush1.msra.mxu0 0.0
    %1719 = vmatprep.subr.mxu0 0.0
    %1720 = vmatpush1.msra.mxu0 0.0
    %1721 = vmatprep.subr.mxu0 0.0
    %1722 = vmatpush1.msra.mxu0 0.0
    %1723 = vmatprep.subr.mxu0 0.0
    %1724 = vmatpush1.msra.mxu0 0.0
    %1725 = vmatprep.subr.mxu0 0.0
    %1726 = vmatpush1.msra.mxu0 0.0
    %1727 = vmatprep.subr.mxu0 0.0
    %1728 = vmatpush1.msra.mxu0 0.0
    %1729 = vmatprep.subr.mxu0 0.0
    %1730 = vmatpush1.msra.mxu0 0.0
    %1731 = vmatprep.subr.mxu0 0.0
    %1732 = vmatpush1.msra.mxu0 0.0
    %1733 = vmatprep.subr.mxu0 0.0
    %1734 = vmatpush1.msra.mxu0 0.0
    %1735 = vmatprep.subr.mxu0 0.0
    %1736 = vmatpush1.msra.mxu0 0.0
    %1737 = vmatprep.subr.mxu0 0.0
    %1738 = vmatpush1.msra.mxu0 0.0
    %1739 = vmatprep.subr.mxu0 0.0
    %1740 = vmatpush1.msra.mxu0 0.0
    %1741 = vmatprep.subr.mxu0 0.0
    %1742 = vmatpush1.msra.mxu0 0.0
    %1743 = vmatprep.subr.mxu0 0.0
    %1744 = vmatpush1.msra.mxu0 0.0
    %1745 = vmatprep.subr.mxu0 0.0
    %1746 = vmatpush1.msra.mxu0 0.0
    %1747 = vmatprep.subr.mxu0 0.0
    %1748 = vmatpush1.msra.mxu0 0.0
    %1749 = vmatprep.subr.mxu0 0.0
    %1750 = vmatpush1.msra.mxu0 0.0
    %1751 = vmatprep.subr.mxu0 0.0
    %1752 = vmatpush1.msra.mxu0 0.0
    %1753 = vmatprep.mubr.f32.mxu0 0.0
    %v1754 = vand.u32 %v1525, 4294901760
    %v1755 = vsub.f32 %v1525, %v1754
    %1756 = vmatmul.mubr.f32.gmra.mrb[0].mxu0 %v1755
    %v1757 = vpop.f32.mrb[0].mxu0
    %v1758 = vadd.f32 %v1682, %v1757
    %v1759 = vpop.f32.mrb[0].mxu0
    %1760 = vdwg.mxu0
    %1761 = vmatprep.subr.mxu0 0.0
    %v1762 = vand.u32 %v1514, 4294901760
    %1763 = vmatpush1.msra.mxu0 %v1762
    %1764 = vmatprep.subr.mxu0 0.0
    %v1765 = vand.u32 %v1520, 4294901760
    %1766 = vmatpush1.msra.mxu0 %v1765
    %1767 = vmatprep.subr.mxu0 0.0
    %1768 = vmatpush1.msra.mxu0 0.0
    %1769 = vmatprep.subr.mxu0 0.0
    %1770 = vmatpush1.msra.mxu0 0.0
    %1771 = vmatprep.subr.mxu0 0.0
    %1772 = vmatpush1.msra.mxu0 0.0
    %1773 = vmatprep.subr.mxu0 0.0
    %1774 = vmatpush1.msra.mxu0 0.0
    %1775 = vmatprep.subr.mxu0 0.0
    %1776 = vmatpush1.msra.mxu0 0.0
    %1777 = vmatprep.subr.mxu0 0.0
    %1778 = vmatpush1.msra.mxu0 0.0
    %1779 = vmatprep.subr.mxu0 0.0
    %1780 = vmatpush1.msra.mxu0 0.0
    %1781 = vmatprep.subr.mxu0 0.0
    %1782 = vmatpush1.msra.mxu0 0.0
    %1783 = vmatprep.subr.mxu0 0.0
    %1784 = vmatpush1.msra.mxu0 0.0
    %1785 = vmatprep.subr.mxu0 0.0
    %1786 = vmatpush1.msra.mxu0 0.0
    %1787 = vmatprep.subr.mxu0 0.0
    %1788 = vmatpush1.msra.mxu0 0.0
    %1789 = vmatprep.subr.mxu0 0.0
    %1790 = vmatpush1.msra.mxu0 0.0
    %1791 = vmatprep.subr.mxu0 0.0
    %1792 = vmatpush1.msra.mxu0 0.0
    %1793 = vmatprep.subr.mxu0 0.0
    %1794 = vmatpush1.msra.mxu0 0.0
    %1795 = vmatprep.subr.mxu0 0.0
    %1796 = vmatpush1.msra.mxu0 0.0
    %1797 = vmatprep.subr.mxu0 0.0
    %1798 = vmatpush1.msra.mxu0 0.0
    %1799 = vmatprep.subr.mxu0 0.0
    %1800 = vmatpush1.msra.mxu0 0.0
    %1801 = vmatprep.subr.mxu0 0.0
    %1802 = vmatpush1.msra.mxu0 0.0
    %1803 = vmatprep.subr.mxu0 0.0
    %1804 = vmatpush1.msra.mxu0 0.0
    %1805 = vmatprep.subr.mxu0 0.0
    %1806 = vmatpush1.msra.mxu0 0.0
    %1807 = vmatprep.subr.mxu0 0.0
    %1808 = vmatpush1.msra.mxu0 0.0
    %1809 = vmatprep.subr.mxu0 0.0
    %1810 = vmatpush1.msra.mxu0 0.0
    %1811 = vmatprep.subr.mxu0 0.0
    %1812 = vmatpush1.msra.mxu0 0.0
    %1813 = vmatprep.subr.mxu0 0.0
    %1814 = vmatpush1.msra.mxu0 0.0
    %1815 = vmatprep.subr.mxu0 0.0
    %1816 = vmatpush1.msra.mxu0 0.0
    %1817 = vmatprep.subr.mxu0 0.0
    %1818 = vmatpush1.msra.mxu0 0.0
    %1819 = vmatprep.subr.mxu0 0.0
    %1820 = vmatpush1.msra.mxu0 0.0
    %1821 = vmatprep.subr.mxu0 0.0
    %1822 = vmatpush1.msra.mxu0 0.0
    %1823 = vmatprep.subr.mxu0 0.0
    %1824 = vmatpush1.msra.mxu0 0.0
    %1825 = vmatprep.subr.mxu0 0.0
    %1826 = vmatpush1.msra.mxu0 0.0
    %1827 = vmatprep.mubr.f32.mxu0 0.0
    %v1828 = vand.u32 %v1525, 4294901760
    %v1829 = vsub.f32 %v1525, %v1828
    %v1830 = vand.u32 %v1829, 4294901760
    %1831 = vmatmul.mubr.f32.gmra.mrb[0].mxu0 %v1830
    %v1832 = vpop.f32.mrb[0].mxu0
    %v1833 = vadd.f32 %v1758, %v1832
    %v1834 = vpop.f32.mrb[0].mxu0
    %1835 = vdwg.mxu0
    %1836 = vmatprep.subr.mxu0 0.0
    %v1837 = vand.u32 %v1514, 4294901760
    %v1838 = vsub.f32 %v1514, %v1837
    %v1839 = vand.u32 %v1838, 4294901760
    %1840 = vmatpush1.msra.mxu0 %v1839
    %1841 = vmatprep.subr.mxu0 0.0
    %v1842 = vand.u32 %v1520, 4294901760
    %v1843 = vsub.f32 %v1520, %v1842
    %v1844 = vand.u32 %v1843, 4294901760
    %1845 = vmatpush1.msra.mxu0 %v1844
    %1846 = vmatprep.subr.mxu0 0.0
    %1847 = vmatpush1.msra.mxu0 0.0
    %1848 = vmatprep.subr.mxu0 0.0
    %1849 = vmatpush1.msra.mxu0 0.0
    %1850 = vmatprep.subr.mxu0 0.0
    %1851 = vmatpush1.msra.mxu0 0.0
    %1852 = vmatprep.subr.mxu0 0.0
    %1853 = vmatpush1.msra.mxu0 0.0
    %1854 = vmatprep.subr.mxu0 0.0
    %1855 = vmatpush1.msra.mxu0 0.0
    %1856 = vmatprep.subr.mxu0 0.0
    %1857 = vmatpush1.msra.mxu0 0.0
    %1858 = vmatprep.subr.mxu0 0.0
    %1859 = vmatpush1.msra.mxu0 0.0
    %1860 = vmatprep.subr.mxu0 0.0
    %1861 = vmatpush1.msra.mxu0 0.0
    %1862 = vmatprep.subr.mxu0 0.0
    %1863 = vmatpush1.msra.mxu0 0.0
    %1864 = vmatprep.subr.mxu0 0.0
    %1865 = vmatpush1.msra.mxu0 0.0
    %1866 = vmatprep.subr.mxu0 0.0
    %1867 = vmatpush1.msra.mxu0 0.0
    %1868 = vmatprep.subr.mxu0 0.0
    %1869 = vmatpush1.msra.mxu0 0.0
    %1870 = vmatprep.subr.mxu0 0.0
    %1871 = vmatpush1.msra.mxu0 0.0
    %1872 = vmatprep.subr.mxu0 0.0
    %1873 = vmatpush1.msra.mxu0 0.0
    %1874 = vmatprep.subr.mxu0 0.0
    %1875 = vmatpush1.msra.mxu0 0.0
    %1876 = vmatprep.subr.mxu0 0.0
    %1877 = vmatpush1.msra.mxu0 0.0
    %1878 = vmatprep.subr.mxu0 0.0
    %1879 = vmatpush1.msra.mxu0 0.0
    %1880 = vmatprep.subr.mxu0 0.0
    %1881 = vmatpush1.msra.mxu0 0.0
    %1882 = vmatprep.subr.mxu0 0.0
    %1883 = vmatpush1.msra.mxu0 0.0
    %1884 = vmatprep.subr.mxu0 0.0
    %1885 = vmatpush1.msra.mxu0 0.0
    %1886 = vmatprep.subr.mxu0 0.0
    %1887 = vmatpush1.msra.mxu0 0.0
    %1888 = vmatprep.subr.mxu0 0.0
    %1889 = vmatpush1.msra.mxu0 0.0
    %1890 = vmatprep.subr.mxu0 0.0
    %1891 = vmatpush1.msra.mxu0 0.0
    %1892 = vmatprep.subr.mxu0 0.0
    %1893 = vmatpush1.msra.mxu0 0.0
    %1894 = vmatprep.subr.mxu0 0.0
    %1895 = vmatpush1.msra.mxu0 0.0
    %1896 = vmatprep.subr.mxu0 0.0
    %1897 = vmatpush1.msra.mxu0 0.0
    %1898 = vmatprep.subr.mxu0 0.0
    %1899 = vmatpush1.msra.mxu0 0.0
    %1900 = vmatprep.subr.mxu0 0.0
    %1901 = vmatpush1.msra.mxu0 0.0
    %1902 = vmatprep.subr.mxu0 0.0
    %1903 = vmatpush1.msra.mxu0 0.0
    %1904 = vmatprep.subr.mxu0 0.0
    %1905 = vmatpush1.msra.mxu0 0.0
    %1906 = vmatprep.mubr.f32.mxu0 0.0
    %v1907 = vand.u32 %v1525, 4294901760
    %1908 = vmatmul.mubr.f32.gmra.mrb[0].mxu0 %v1907
    %v1909 = vpop.f32.mrb[0].mxu0
    %v1910 = vadd.f32 %v1833, %v1909
    %v1911 = vpop.f32.mrb[0].mxu0
    %1912 = vdwg.mxu0
    %1913 = vmatprep.subr.mxu0 0.0
    %v1914 = vand.u32 %v1514, 4294901760
    %1915 = vmatpush1.msra.mxu0 %v1914
    %1916 = vmatprep.subr.mxu0 0.0
    %v1917 = vand.u32 %v1520, 4294901760
    %1918 = vmatpush1.msra.mxu0 %v1917
    %1919 = vmatprep.subr.mxu0 0.0
    %1920 = vmatpush1.msra.mxu0 0.0
    %1921 = vmatprep.subr.mxu0 0.0
    %1922 = vmatpush1.msra.mxu0 0.0
    %1923 = vmatprep.subr.mxu0 0.0
    %1924 = vmatpush1.msra.mxu0 0.0
    %1925 = vmatprep.subr.mxu0 0.0
    %1926 = vmatpush1.msra.mxu0 0.0
    %1927 = vmatprep.subr.mxu0 0.0
    %1928 = vmatpush1.msra.mxu0 0.0
    %1929 = vmatprep.subr.mxu0 0.0
    %1930 = vmatpush1.msra.mxu0 0.0
    %1931 = vmatprep.subr.mxu0 0.0
    %1932 = vmatpush1.msra.mxu0 0.0
    %1933 = vmatprep.subr.mxu0 0.0
    %1934 = vmatpush1.msra.mxu0 0.0
    %1935 = vmatprep.subr.mxu0 0.0
    %1936 = vmatpush1.msra.mxu0 0.0
    %1937 = vmatprep.subr.mxu0 0.0
    %1938 = vmatpush1.msra.mxu0 0.0
    %1939 = vmatprep.subr.mxu0 0.0
    %1940 = vmatpush1.msra.mxu0 0.0
    %1941 = vmatprep.subr.mxu0 0.0
    %1942 = vmatpush1.msra.mxu0 0.0
    %1943 = vmatprep.subr.mxu0 0.0
    %1944 = vmatpush1.msra.mxu0 0.0
    %1945 = vmatprep.subr.mxu0 0.0
    %1946 = vmatpush1.msra.mxu0 0.0
    %1947 = vmatprep.subr.mxu0 0.0
    %1948 = vmatpush1.msra.mxu0 0.0
    %1949 = vmatprep.subr.mxu0 0.0
    %1950 = vmatpush1.msra.mxu0 0.0
    %1951 = vmatprep.subr.mxu0 0.0
    %1952 = vmatpush1.msra.mxu0 0.0
    %1953 = vmatprep.subr.mxu0 0.0
    %1954 = vmatpush1.msra.mxu0 0.0
    %1955 = vmatprep.subr.mxu0 0.0
    %1956 = vmatpush1.msra.mxu0 0.0
    %1957 = vmatprep.subr.mxu0 0.0
    %1958 = vmatpush1.msra.mxu0 0.0
    %1959 = vmatprep.subr.mxu0 0.0
    %1960 = vmatpush1.msra.mxu0 0.0
    %1961 = vmatprep.subr.mxu0 0.0
    %1962 = vmatpush1.msra.mxu0 0.0
    %1963 = vmatprep.subr.mxu0 0.0
    %1964 = vmatpush1.msra.mxu0 0.0
    %1965 = vmatprep.subr.mxu0 0.0
    %1966 = vmatpush1.msra.mxu0 0.0
    %1967 = vmatprep.subr.mxu0 0.0
    %1968 = vmatpush1.msra.mxu0 0.0
    %1969 = vmatprep.subr.mxu0 0.0
    %1970 = vmatpush1.msra.mxu0 0.0
    %1971 = vmatprep.subr.mxu0 0.0
    %1972 = vmatpush1.msra.mxu0 0.0
    %1973 = vmatprep.subr.mxu0 0.0
    %1974 = vmatpush1.msra.mxu0 0.0
    %1975 = vmatprep.subr.mxu0 0.0
    %1976 = vmatpush1.msra.mxu0 0.0
    %1977 = vmatprep.subr.mxu0 0.0
    %1978 = vmatpush1.msra.mxu0 0.0
    %1979 = vmatprep.mubr.f32.mxu0 0.0
    %v1980 = vand.u32 %v1525, 4294901760
    %1981 = vmatmul.mubr.f32.gmra.mrb[0].mxu0 %v1980
    %v1982 = vpop.f32.mrb[0].mxu0
    %v1983 = vadd.f32 %v1910, %v1982
    %v1984 = vpop.f32.mrb[0].mxu0
    %1985 = vdwg.mxu0
    %vm1986 = vcmask 64512
    %1987 = vst.msk [vmem:[#allocation2] sm:$0xff] %vm1986, %v1983
    // Predicated region
    $region14: #{spectral_interpolation_forward.1} parent=1 // pred_check
      _
    $region15: #{spectral_interpolation_forward.1} parent=1 // pred_check_branch
      %1989 = sbr.rel (0) target = $region17
    $region16: #{spectral_interpolation_forward.1} parent=1 // pred_region
      %s1991 = ssub.s32 128, 128
      %1992 = vsyncadd [#allocation3], %s1991
      %s1994 = sshll.u32 [#allocation2], 4
      %s1995 = int_to_ptr.vmem [resolvable:$true] %s1994
      %1997 = dma.vmem_to_hbm [thread:$0]  %s1995, 128, %s3, [#allocation3]
    $region17: #{spectral_interpolation_forward.1} parent=1 // pred_fallthru
      _
    // Predicated region
    $region18: #{spectral_interpolation_forward.1} parent=1 // pred_check
      _
    $region19: #{spectral_interpolation_forward.1} parent=1 // pred_check_branch
      %1999 = sbr.rel (0) target = $region21
    $region20: #{spectral_interpolation_forward.1} parent=1 // pred_region
      %2000 = dma.done [#allocation3], 128
    $region21: #{spectral_interpolation_forward.1} parent=1 // pred_fallthru
      _
    %2001 = vsyncpa [#allocation3], 1

</llo_original>
